<compile_context>
chip_gen: v7x
topology: tpu7x:2x2x1
jax: 0.10.0
libtpu: 0.0.40
codegen_flags: <defaults>
</compile_context>

<pallas_src>
import math

import jax
import jax.numpy as jnp
from jax.experimental import pallas as pl
from jax.experimental.pallas import tpu as pltpu

# ---- small synthetic RoBERTa-like config (codebert-base shrunk) ----
VOCAB = 128
MAX_POS = 64
HIDDEN = 32
N_HEADS = 4
HEAD_DIM = HIDDEN // N_HEADS
INTERMEDIATE = 64
N_LAYERS = 2
LN_EPS = 1e-5
PAD_IDX = 1
CLS_HIDDEN = HIDDEN // 2
NUM_CLASSES = 2
# TODO(synk): pretrained microsoft/codebert-base weights / tokenizer cannot be
# loaded in-script; encoder is a deterministic random-init RoBERTa-style stack.
# freeze_layers only affects requires_grad (training) and is a no-op in forward.


def _ln(x, g, b, eps=LN_EPS):
    mean = jnp.mean(x, axis=-1, keepdims=True)
    xc = x - mean
    var = jnp.mean(xc * xc, axis=-1, keepdims=True)
    return xc * jax.lax.rsqrt(var + eps) * g + b


# ---------------- single fused forward kernel ----------------
# grid = (B, N_LAYERS); one program per (batch element, layer).  The layer axis
# is the innermost (serial) axis; the activation x is carried in a VMEM scratch
# across it.  Embedding-LN runs at layer==0, the classifier at layer==last, and
# only the (1,1,NUM_CLASSES) logits block is written back to HBM.
def _fused_forward_kernel(x_ref, m_ref, eg_ref, eb_ref,
                          wqkv_ref, bqkv_ref, wo_ref, bo_ref,
                          l1g_ref, l1b_ref, wi_ref, bi_ref,
                          wo2_ref, bo2_ref, l2g_ref, l2b_ref,
                          cw1_ref, cb1_ref, cw2_ref, cb2_ref,
                          o_ref, x_sc):
    layer = pl.program_id(1)

    # --- layer 0: embedding LayerNorm into the resident activation scratch ---
    @pl.when(layer == 0)
    def _():
        x_sc[...] = _ln(x_ref[0], eg_ref[...], eb_ref[...])

    x = x_sc[...]                      # (S, H) resident f32 activations
    addmask = m_ref[0]                 # (1, S) additive attention mask
    S = x.shape[0]

    # --- self-attention: fused QKV projection (scale pre-folded into Q) ---
    qkv = jnp.dot(x, wqkv_ref[0], preferred_element_type=jnp.float32) + bqkv_ref[0]
    wo = wo_ref[0]                     # (H, H)
    attn = bo_ref[0]                   # (1, H) output-projection bias (broadcasts)
    # TODO(synk): at real codebert size (H=768, 12 heads) replace the static
    # per-head loop with head-batched einsums ('hqd,hkd->hqk'); at HEAD_DIM=8
    # the 2-D dot form is kept for robust lowering, and the lane-axis concat is
    # avoided by accumulating the output projection per head.
    for h in range(N_HEADS):
        lo = h * HEAD_DIM
        qh = qkv[:, lo:lo + HEAD_DIM]
        kh = qkv[:, HIDDEN + lo:HIDDEN + lo + HEAD_DIM]
        vh = qkv[:, 2 * HIDDEN + lo:2 * HIDDEN + lo + HEAD_DIM]
        s = jnp.dot(qh, kh.T, preferred_element_type=jnp.float32) + addmask
        s = s - jnp.max(s, axis=-1, keepdims=True)
        p = jnp.exp(s)
        p = p / jnp.sum(p, axis=-1, keepdims=True)          # exact softmax denom
        ctx = jnp.dot(p, vh, preferred_element_type=jnp.float32)        # (S, dh)
        attn = attn + jnp.dot(ctx, wo[lo:lo + HEAD_DIM, :],
                              preferred_element_type=jnp.float32)

    x1 = _ln(attn + x, l1g_ref[0], l1b_ref[0])

    # --- FFN ---
    inter = jnp.dot(x1, wi_ref[0], preferred_element_type=jnp.float32) + bi_ref[0]
    # TODO(synk): HF RoBERTa uses erf-GELU; tanh-approx GELU used here (EUP path).
    inter = jax.nn.gelu(inter, approximate=True)
    ffn = jnp.dot(inter, wo2_ref[0], preferred_element_type=jnp.float32) + bo2_ref[0]
    x_new = _ln(ffn + x1, l2g_ref[0], l2b_ref[0])
    x_sc[...] = x_new                  # carry to next layer (stays in VMEM)

    # --- last layer: fused classifier head on the CLS row; only logits leave ---
    @pl.when(layer == pl.num_programs(1) - 1)
    def _():
        cls = x_new[0:1, :]                                   # (1, H)
        hcls = jnp.maximum(
            jnp.dot(cls, cw1_ref[...], preferred_element_type=jnp.float32)
            + cb1_ref[...], 0.0)
        # Dropout(0.1) is identity at inference.
        o_ref[0] = jnp.dot(hcls, cw2_ref[...],
                           preferred_element_type=jnp.float32) + cb2_ref[...]


# ---------------- parameters (stacked per-layer weights, all f32) ----------------
def init_params(key):
    kit = iter(jax.random.split(key, 16))

    def nrm(shape):
        return jax.random.normal(next(kit), shape, jnp.float32) * 0.02

    L, H, I = N_LAYERS, HIDDEN, INTERMEDIATE
    # fused QKV weight [wq | wk | wv]; fold 1/sqrt(head_dim) into the Q columns
    wqkv = nrm((L, H, 3 * H))
    wqkv = wqkv.at[:, :, :H].multiply(1.0 / math.sqrt(HEAD_DIM))

    return {
        "word_emb": nrm((VOCAB, H)),
        "pos_emb": nrm((MAX_POS, H)),
        "type_emb": nrm((1, H)),
        "emb_ln_g": jnp.ones((1, H), jnp.float32),
        "emb_ln_b": jnp.zeros((1, H), jnp.float32),
        "wqkv": wqkv,
        "bqkv": jnp.zeros((L, 1, 3 * H), jnp.float32),
        "wo": nrm((L, H, H)),
        "bo": jnp.zeros((L, 1, H), jnp.float32),
        "ln1_g": jnp.ones((L, 1, H), jnp.float32),
        "ln1_b": jnp.zeros((L, 1, H), jnp.float32),
        "wi": nrm((L, H, I)),
        "bi": jnp.zeros((L, 1, I), jnp.float32),
        "wo2": nrm((L, I, H)),
        "bo2": jnp.zeros((L, 1, H), jnp.float32),
        "ln2_g": jnp.ones((L, 1, H), jnp.float32),
        "ln2_b": jnp.zeros((L, 1, H), jnp.float32),
        "cls_w1": nrm((H, CLS_HIDDEN)),
        "cls_b1": jnp.zeros((1, CLS_HIDDEN), jnp.float32),
        "cls_w2": nrm((CLS_HIDDEN, NUM_CLASSES)),
        "cls_b2": jnp.zeros((1, NUM_CLASSES), jnp.float32),
    }


# ---------------- full forward (DefectPredictionModel.forward) ----------------
def defect_prediction_forward(params, input_ids, attention_mask):
    B, S = input_ids.shape
    mask_f = attention_mask.astype(jnp.float32)

    # --- RoBERTa embeddings (table gathers = plain-JAX glue) ---
    pos_ids = (jnp.cumsum(attention_mask, axis=1) * attention_mask
               + PAD_IDX).astype(jnp.int32)
    x_emb = (params["word_emb"][input_ids]
             + params["pos_emb"][pos_ids]
             + params["type_emb"][0][None, None, :]).astype(jnp.float32)
    # additive attention mask kept compact: (B, 1, S)
    addmask = ((1.0 - mask_f) * -1e9)[:, None, :]

    def bspec(a):   # per-batch block, constant over the layer axis
        return pl.BlockSpec((1,) + a.shape[1:],
                            lambda b, l: (b,) + (0,) * (a.ndim - 1))

    def lspec(a):   # stacked per-layer weight, indexed by the layer axis
        return pl.BlockSpec((1,) + a.shape[1:],
                            lambda b, l: (l,) + (0,) * (a.ndim - 1))

    def cspec(a):   # whole-array constant
        return pl.BlockSpec(a.shape, lambda b, l: (0,) * a.ndim)

    args = (x_emb, addmask,
            params["emb_ln_g"], params["emb_ln_b"],
            params["wqkv"], params["bqkv"], params["wo"], params["bo"],
            params["ln1_g"], params["ln1_b"],
            params["wi"], params["bi"], params["wo2"], params["bo2"],
            params["ln2_g"], params["ln2_b"],
            params["cls_w1"], params["cls_b1"],
            params["cls_w2"], params["cls_b2"])
    in_specs = ([bspec(x_emb), bspec(addmask),
                 cspec(params["emb_ln_g"]), cspec(params["emb_ln_b"])]
                + [lspec(a) for a in args[4:16]]
                + [cspec(a) for a in args[16:]])

    # VMEM budget sanity check (toy config is ~tens of KB).  TODO(synk): at real
    # codebert-base (H=768, S=512) raise vmem_limit_bytes and tile S flash-style
    # on v7x (64 MiB physical / 32 MiB scoped default); v5e/v6e's 128 MiB is OK.
    vmem_est = 4 * (3 * S * HIDDEN
                    + 2 * sum(math.prod(a.shape[1:]) for a in args[4:16])
                    + sum(math.prod(a.shape) for a in args[16:]))
    assert vmem_est < 32 * 2**20, "raise vmem_limit_bytes / tile S for this config"

    out = pl.pallas_call(
        _fused_forward_kernel,
        out_shape=jax.ShapeDtypeStruct((B, 1, NUM_CLASSES), jnp.float32),
        grid=(B, N_LAYERS),
        in_specs=in_specs,
        out_specs=pl.BlockSpec((1, 1, NUM_CLASSES), lambda b, l: (b, 0, 0)),
        scratch_shapes=[pltpu.VMEM((S, HIDDEN), jnp.float32)],
        compiler_params=pltpu.CompilerParams(
            dimension_semantics=("parallel", "arbitrary")),
    )(*args)
    return out.reshape(B, NUM_CLASSES)


if __name__ == "__main__":
    key = jax.random.PRNGKey(0)
    pkey, ikey = jax.random.split(key)
    params = init_params(pkey)

    B, S = 2, 8
    input_ids = jax.random.randint(ikey, (B, S), 2, VOCAB, dtype=jnp.int32)
    input_ids = input_ids.at[:, 0].set(0)          # <s> / CLS token
    attention_mask = jnp.ones((B, S), dtype=jnp.int32)

    fwd = jax.jit(defect_prediction_forward)
    logits = jax.block_until_ready(fwd(params, input_ids, attention_mask))
    assert logits.shape == (B, NUM_CLASSES) and logits.dtype == jnp.float32
    print("KERNEL_OK")
</pallas_src>

<mosaic_0001>
module attributes {stable_mosaic.version = 11 : i64} {
  func.func @_fused_forward_kernel(%arg0: i32, %arg1: i32, %arg2: memref<1x8x32xf32, #tpu.memory_space<vmem>>, %arg3: memref<1x1x8xf32, #tpu.memory_space<vmem>>, %arg4: memref<1x32xf32, #tpu.memory_space<vmem>>, %arg5: memref<1x32xf32, #tpu.memory_space<vmem>>, %arg6: memref<1x32x96xf32, #tpu.memory_space<vmem>>, %arg7: memref<1x1x96xf32, #tpu.memory_space<vmem>>, %arg8: memref<1x32x32xf32, #tpu.memory_space<vmem>>, %arg9: memref<1x1x32xf32, #tpu.memory_space<vmem>>, %arg10: memref<1x1x32xf32, #tpu.memory_space<vmem>>, %arg11: memref<1x1x32xf32, #tpu.memory_space<vmem>>, %arg12: memref<1x32x64xf32, #tpu.memory_space<vmem>>, %arg13: memref<1x1x64xf32, #tpu.memory_space<vmem>>, %arg14: memref<1x64x32xf32, #tpu.memory_space<vmem>>, %arg15: memref<1x1x32xf32, #tpu.memory_space<vmem>>, %arg16: memref<1x1x32xf32, #tpu.memory_space<vmem>>, %arg17: memref<1x1x32xf32, #tpu.memory_space<vmem>>, %arg18: memref<32x16xf32, #tpu.memory_space<vmem>>, %arg19: memref<1x16xf32, #tpu.memory_space<vmem>>, %arg20: memref<16x2xf32, #tpu.memory_space<vmem>>, %arg21: memref<1x2xf32, #tpu.memory_space<vmem>>, %arg22: memref<1x1x2xf32, #tpu.memory_space<vmem>>, %arg23: memref<8x32xf32, #tpu.memory_space<vmem>>) attributes {dimension_semantics = [#tpu.dimension_semantics<parallel>, #tpu.dimension_semantics<arbitrary>], iteration_bounds = array<i64: 2, 2>, scalar_prefetch = 0 : i64, scratch_operands = 1 : i64, tpu.core_type = #tpu.core_type<tc>, window_params = [{transform_indices = @transform_0, window_bounds = array<i64: 1, 8, 32>}, {transform_indices = @transform_1, window_bounds = array<i64: 1, 1, 8>}, {pipeline_mode = #tpu.pipeline_mode<synchronous>, transform_indices = @transform_2, window_bounds = array<i64: 1, 32>}, {pipeline_mode = #tpu.pipeline_mode<synchronous>, transform_indices = @transform_3, window_bounds = array<i64: 1, 32>}, {transform_indices = @transform_4, window_bounds = array<i64: 1, 32, 96>}, {transform_indices = @transform_5, window_bounds = array<i64: 1, 1, 96>}, {transform_indices = @transform_6, window_bounds = array<i64: 1, 32, 32>}, {transform_indices = @transform_7, window_bounds = array<i64: 1, 1, 32>}, {transform_indices = @transform_8, window_bounds = array<i64: 1, 1, 32>}, {transform_indices = @transform_9, window_bounds = array<i64: 1, 1, 32>}, {transform_indices = @transform_10, window_bounds = array<i64: 1, 32, 64>}, {transform_indices = @transform_11, window_bounds = array<i64: 1, 1, 64>}, {transform_indices = @transform_12, window_bounds = array<i64: 1, 64, 32>}, {transform_indices = @transform_13, window_bounds = array<i64: 1, 1, 32>}, {transform_indices = @transform_14, window_bounds = array<i64: 1, 1, 32>}, {transform_indices = @transform_15, window_bounds = array<i64: 1, 1, 32>}, {pipeline_mode = #tpu.pipeline_mode<synchronous>, transform_indices = @transform_16, window_bounds = array<i64: 32, 16>}, {pipeline_mode = #tpu.pipeline_mode<synchronous>, transform_indices = @transform_17, window_bounds = array<i64: 1, 16>}, {pipeline_mode = #tpu.pipeline_mode<synchronous>, transform_indices = @transform_18, window_bounds = array<i64: 16, 2>}, {pipeline_mode = #tpu.pipeline_mode<synchronous>, transform_indices = @transform_19, window_bounds = array<i64: 1, 2>}, {transform_indices = @transform_20, window_bounds = array<i64: 1, 1, 2>}]} {
    %c0_i32 = arith.constant 0 : i32
    %0 = arith.cmpi eq, %arg1, %c0_i32 : i32
    %1 = arith.extui %0 : i1 to i32
    %c0_i32_0 = arith.constant 0 : i32
    %2 = arith.cmpi ne, %1, %c0_i32_0 : i32
    scf.if %2 {
      %c0_80 = arith.constant 0 : index
      %c0_81 = arith.constant 0 : index
      %c0_82 = arith.constant 0 : index
      %179 = vector.load %arg2[%c0_80, %c0_81, %c0_82] : memref<1x8x32xf32, #tpu.memory_space<vmem>>, vector<1x8x32xf32>
      %180 = vector.shape_cast %179 : vector<1x8x32xf32> to vector<8x32xf32>
      %c0_83 = arith.constant 0 : index
      %c0_84 = arith.constant 0 : index
      %181 = vector.load %arg4[%c0_83, %c0_84] : memref<1x32xf32, #tpu.memory_space<vmem>>, vector<1x32xf32>
      %c0_85 = arith.constant 0 : index
      %c0_86 = arith.constant 0 : index
      %182 = vector.load %arg5[%c0_85, %c0_86] : memref<1x32xf32, #tpu.memory_space<vmem>>, vector<1x32xf32>
      %cst_87 = arith.constant dense<0.000000e+00> : vector<8xf32>
      %183 = vector.multi_reduction <add>, %180, %cst_87 [1] : vector<8x32xf32> to vector<8xf32>
      %184 = vector.shape_cast %183 : vector<8xf32> to vector<8x1xf32>
      %cst_88 = arith.constant 3.200000e+01 : f32
      %185 = vector.broadcast %cst_88 : f32 to vector<8x1xf32>
      %186 = arith.divf %184, %185 : vector<8x1xf32>
      %187 = vector.broadcast %186 : vector<8x1xf32> to vector<8x32xf32>
      %188 = arith.subf %180, %187 : vector<8x32xf32>
      %189 = arith.mulf %188, %188 : vector<8x32xf32>
      %cst_89 = arith.constant dense<0.000000e+00> : vector<8xf32>
      %190 = vector.multi_reduction <add>, %189, %cst_89 [1] : vector<8x32xf32> to vector<8xf32>
      %191 = vector.shape_cast %190 : vector<8xf32> to vector<8x1xf32>
      %cst_90 = arith.constant 3.200000e+01 : f32
      %192 = vector.broadcast %cst_90 : f32 to vector<8x1xf32>
      %193 = arith.divf %191, %192 : vector<8x1xf32>
      %cst_91 = arith.constant 9.99999974E-6 : f32
      %194 = vector.broadcast %cst_91 : f32 to vector<8x1xf32>
      %195 = arith.addf %193, %194 : vector<8x1xf32>
      %196 = math.rsqrt %195 : vector<8x1xf32>
      %197 = vector.broadcast %196 : vector<8x1xf32> to vector<8x32xf32>
      %198 = arith.mulf %188, %197 : vector<8x32xf32>
      %199 = vector.broadcast %181 : vector<1x32xf32> to vector<8x32xf32>
      %200 = arith.mulf %198, %199 : vector<8x32xf32>
      %201 = vector.broadcast %182 : vector<1x32xf32> to vector<8x32xf32>
      %202 = arith.addf %200, %201 : vector<8x32xf32>
      %c0_92 = arith.constant 0 : index
      %c0_93 = arith.constant 0 : index
      %203 = vector.load %arg23[%c0_92, %c0_93] : memref<8x32xf32, #tpu.memory_space<vmem>>, vector<8x32xf32>
      tpu.vector_store %arg23[%c0_92, %c0_93], %202 {strides = array<i32>} : memref<8x32xf32, #tpu.memory_space<vmem>>, vector<8x32xf32>,
    } else {
    }
    %c0 = arith.constant 0 : index
    %c0_1 = arith.constant 0 : index
    %3 = vector.load %arg23[%c0, %c0_1] : memref<8x32xf32, #tpu.memory_space<vmem>>, vector<8x32xf32>
    %c0_2 = arith.constant 0 : index
    %c0_3 = arith.constant 0 : index
    %c0_4 = arith.constant 0 : index
    %4 = vector.load %arg3[%c0_2, %c0_3, %c0_4] : memref<1x1x8xf32, #tpu.memory_space<vmem>>, vector<1x1x8xf32>
    %5 = vector.shape_cast %4 : vector<1x1x8xf32> to vector<1x8xf32>
    %c0_5 = arith.constant 0 : index
    %c0_6 = arith.constant 0 : index
    %c0_7 = arith.constant 0 : index
    %6 = vector.load %arg6[%c0_5, %c0_6, %c0_7] : memref<1x32x96xf32, #tpu.memory_space<vmem>>, vector<1x32x96xf32>
    %7 = vector.shape_cast %6 : vector<1x32x96xf32> to vector<32x96xf32>
    %cst = arith.constant dense<0.000000e+00> : vector<8x96xf32>
    %8 = tpu.matmul %3, %7, %cst {dimension_numbers = #tpu.dot_dimension_numbers<[1], [0], [0], [1], [0, 0, 1, 1], [], []>} : vector<8x32xf32>, vector<32x96xf32>, vector<8x96xf32> -> vector<8x96xf32>
    %c0_8 = arith.constant 0 : index
    %c0_9 = arith.constant 0 : index
    %c0_10 = arith.constant 0 : index
    %9 = vector.load %arg7[%c0_8, %c0_9, %c0_10] : memref<1x1x96xf32, #tpu.memory_space<vmem>>, vector<1x1x96xf32>
    %10 = vector.shape_cast %9 : vector<1x1x96xf32> to vector<1x96xf32>
    %11 = vector.broadcast %10 : vector<1x96xf32> to vector<8x96xf32>
    %12 = arith.addf %8, %11 : vector<8x96xf32>
    %c0_11 = arith.constant 0 : index
    %c0_12 = arith.constant 0 : index
    %c0_13 = arith.constant 0 : index
    %13 = vector.load %arg8[%c0_11, %c0_12, %c0_13] : memref<1x32x32xf32, #tpu.memory_space<vmem>>, vector<1x32x32xf32>
    %14 = vector.shape_cast %13 : vector<1x32x32xf32> to vector<32x32xf32>
    %c0_14 = arith.constant 0 : index
    %c0_15 = arith.constant 0 : index
    %c0_16 = arith.constant 0 : index
    %15 = vector.load %arg9[%c0_14, %c0_15, %c0_16] : memref<1x1x32xf32, #tpu.memory_space<vmem>>, vector<1x1x32xf32>
    %16 = vector.shape_cast %15 : vector<1x1x32xf32> to vector<1x32xf32>
    %17 = vector.extract_strided_slice %12 {offsets = [0, 0], sizes = [8, 8], strides = [1, 1]} : vector<8x96xf32> to vector<8x8xf32>
    %18 = vector.extract_strided_slice %12 {offsets = [0, 32], sizes = [8, 8], strides = [1, 1]} : vector<8x96xf32> to vector<8x8xf32>
    %19 = vector.extract_strided_slice %12 {offsets = [0, 64], sizes = [8, 8], strides = [1, 1]} : vector<8x96xf32> to vector<8x8xf32>
    %20 = tpu.transpose %18, [1, 0] : vector<8x8xf32> -> vector<8x8xf32>
    %cst_17 = arith.constant dense<0.000000e+00> : vector<8x8xf32>
    %21 = tpu.matmul %17, %20, %cst_17 {dimension_numbers = #tpu.dot_dimension_numbers<[1], [0], [0], [1], [0, 0, 1, 1], [], []>} : vector<8x8xf32>, vector<8x8xf32>, vector<8x8xf32> -> vector<8x8xf32>
    %22 = vector.broadcast %5 : vector<1x8xf32> to vector<8x8xf32>
    %23 = arith.addf %21, %22 : vector<8x8xf32>
    %cst_18 = arith.constant dense<0xFF800000> : vector<8xf32>
    %24 = vector.multi_reduction <maximumf>, %23, %cst_18 [1] : vector<8x8xf32> to vector<8xf32>
    %25 = vector.shape_cast %24 : vector<8xf32> to vector<8x1xf32>
    %26 = vector.broadcast %25 : vector<8x1xf32> to vector<8x8xf32>
    %27 = arith.subf %23, %26 : vector<8x8xf32>
    %28 = math.exp %27 : vector<8x8xf32>
    %cst_19 = arith.constant dense<0.000000e+00> : vector<8xf32>
    %29 = vector.multi_reduction <add>, %28, %cst_19 [1] : vector<8x8xf32> to vector<8xf32>
    %30 = vector.shape_cast %29 : vector<8xf32> to vector<8x1xf32>
    %31 = vector.broadcast %30 : vector<8x1xf32> to vector<8x8xf32>
    %32 = arith.divf %28, %31 : vector<8x8xf32>
    %cst_20 = arith.constant dense<0.000000e+00> : vector<8x8xf32>
    %33 = tpu.matmul %32, %19, %cst_20 {dimension_numbers = #tpu.dot_dimension_numbers<[1], [0], [0], [1], [0, 0, 1, 1], [], []>} : vector<8x8xf32>, vector<8x8xf32>, vector<8x8xf32> -> vector<8x8xf32>
    %34 = vector.extract_strided_slice %14 {offsets = [0, 0], sizes = [8, 32], strides = [1, 1]} : vector<32x32xf32> to vector<8x32xf32>
    %cst_21 = arith.constant dense<0.000000e+00> : vector<8x32xf32>
    %35 = tpu.matmul %33, %34, %cst_21 {dimension_numbers = #tpu.dot_dimension_numbers<[1], [0], [0], [1], [0, 0, 1, 1], [], []>} : vector<8x8xf32>, vector<8x32xf32>, vector<8x32xf32> -> vector<8x32xf32>
    %36 = vector.broadcast %16 : vector<1x32xf32> to vector<8x32xf32>
    %37 = arith.addf %36, %35 : vector<8x32xf32>
    %38 = vector.extract_strided_slice %12 {offsets = [0, 8], sizes = [8, 8], strides = [1, 1]} : vector<8x96xf32> to vector<8x8xf32>
    %39 = vector.extract_strided_slice %12 {offsets = [0, 40], sizes = [8, 8], strides = [1, 1]} : vector<8x96xf32> to vector<8x8xf32>
    %40 = vector.extract_strided_slice %12 {offsets = [0, 72], sizes = [8, 8], strides = [1, 1]} : vector<8x96xf32> to vector<8x8xf32>
    %41 = tpu.transpose %39, [1, 0] : vector<8x8xf32> -> vector<8x8xf32>
    %cst_22 = arith.constant dense<0.000000e+00> : vector<8x8xf32>
    %42 = tpu.matmul %38, %41, %cst_22 {dimension_numbers = #tpu.dot_dimension_numbers<[1], [0], [0], [1], [0, 0, 1, 1], [], []>} : vector<8x8xf32>, vector<8x8xf32>, vector<8x8xf32> -> vector<8x8xf32>
    %43 = vector.broadcast %5 : vector<1x8xf32> to vector<8x8xf32>
    %44 = arith.addf %42, %43 : vector<8x8xf32>
    %cst_23 = arith.constant dense<0xFF800000> : vector<8xf32>
    %45 = vector.multi_reduction <maximumf>, %44, %cst_23 [1] : vector<8x8xf32> to vector<8xf32>
    %46 = vector.shape_cast %45 : vector<8xf32> to vector<8x1xf32>
    %47 = vector.broadcast %46 : vector<8x1xf32> to vector<8x8xf32>
    %48 = arith.subf %44, %47 : vector<8x8xf32>
    %49 = math.exp %48 : vector<8x8xf32>
    %cst_24 = arith.constant dense<0.000000e+00> : vector<8xf32>
    %50 = vector.multi_reduction <add>, %49, %cst_24 [1] : vector<8x8xf32> to vector<8xf32>
    %51 = vector.shape_cast %50 : vector<8xf32> to vector<8x1xf32>
    %52 = vector.broadcast %51 : vector<8x1xf32> to vector<8x8xf32>
    %53 = arith.divf %49, %52 : vector<8x8xf32>
    %cst_25 = arith.constant dense<0.000000e+00> : vector<8x8xf32>
    %54 = tpu.matmul %53, %40, %cst_25 {dimension_numbers = #tpu.dot_dimension_numbers<[1], [0], [0], [1], [0, 0, 1, 1], [], []>} : vector<8x8xf32>, vector<8x8xf32>, vector<8x8xf32> -> vector<8x8xf32>
    %55 = vector.extract_strided_slice %14 {offsets = [8, 0], sizes = [8, 32], strides = [1, 1]} : vector<32x32xf32> to vector<8x32xf32>
    %cst_26 = arith.constant dense<0.000000e+00> : vector<8x32xf32>
    %56 = tpu.matmul %54, %55, %cst_26 {dimension_numbers = #tpu.dot_dimension_numbers<[1], [0], [0], [1], [0, 0, 1, 1], [], []>} : vector<8x8xf32>, vector<8x32xf32>, vector<8x32xf32> -> vector<8x32xf32>
    %57 = arith.addf %37, %56 : vector<8x32xf32>
    %58 = vector.extract_strided_slice %12 {offsets = [0, 16], sizes = [8, 8], strides = [1, 1]} : vector<8x96xf32> to vector<8x8xf32>
    %59 = vector.extract_strided_slice %12 {offsets = [0, 48], sizes = [8, 8], strides = [1, 1]} : vector<8x96xf32> to vector<8x8xf32>
    %60 = vector.extract_strided_slice %12 {offsets = [0, 80], sizes = [8, 8], strides = [1, 1]} : vector<8x96xf32> to vector<8x8xf32>
    %61 = tpu.transpose %59, [1, 0] : vector<8x8xf32> -> vector<8x8xf32>
    %cst_27 = arith.constant dense<0.000000e+00> : vector<8x8xf32>
    %62 = tpu.matmul %58, %61, %cst_27 {dimension_numbers = #tpu.dot_dimension_numbers<[1], [0], [0], [1], [0, 0, 1, 1], [], []>} : vector<8x8xf32>, vector<8x8xf32>, vector<8x8xf32> -> vector<8x8xf32>
    %63 = vector.broadcast %5 : vector<1x8xf32> to vector<8x8xf32>
    %64 = arith.addf %62, %63 : vector<8x8xf32>
    %cst_28 = arith.constant dense<0xFF800000> : vector<8xf32>
    %65 = vector.multi_reduction <maximumf>, %64, %cst_28 [1] : vector<8x8xf32> to vector<8xf32>
    %66 = vector.shape_cast %65 : vector<8xf32> to vector<8x1xf32>
    %67 = vector.broadcast %66 : vector<8x1xf32> to vector<8x8xf32>
    %68 = arith.subf %64, %67 : vector<8x8xf32>
    %69 = math.exp %68 : vector<8x8xf32>
    %cst_29 = arith.constant dense<0.000000e+00> : vector<8xf32>
    %70 = vector.multi_reduction <add>, %69, %cst_29 [1] : vector<8x8xf32> to vector<8xf32>
    %71 = vector.shape_cast %70 : vector<8xf32> to vector<8x1xf32>
    %72 = vector.broadcast %71 : vector<8x1xf32> to vector<8x8xf32>
    %73 = arith.divf %69, %72 : vector<8x8xf32>
    %cst_30 = arith.constant dense<0.000000e+00> : vector<8x8xf32>
    %74 = tpu.matmul %73, %60, %cst_30 {dimension_numbers = #tpu.dot_dimension_numbers<[1], [0], [0], [1], [0, 0, 1, 1], [], []>} : vector<8x8xf32>, vector<8x8xf32>, vector<8x8xf32> -> vector<8x8xf32>
    %75 = vector.extract_strided_slice %14 {offsets = [16, 0], sizes = [8, 32], strides = [1, 1]} : vector<32x32xf32> to vector<8x32xf32>
    %cst_31 = arith.constant dense<0.000000e+00> : vector<8x32xf32>
    %76 = tpu.matmul %74, %75, %cst_31 {dimension_numbers = #tpu.dot_dimension_numbers<[1], [0], [0], [1], [0, 0, 1, 1], [], []>} : vector<8x8xf32>, vector<8x32xf32>, vector<8x32xf32> -> vector<8x32xf32>
    %77 = arith.addf %57, %76 : vector<8x32xf32>
    %78 = vector.extract_strided_slice %12 {offsets = [0, 24], sizes = [8, 8], strides = [1, 1]} : vector<8x96xf32> to vector<8x8xf32>
    %79 = vector.extract_strided_slice %12 {offsets = [0, 56], sizes = [8, 8], strides = [1, 1]} : vector<8x96xf32> to vector<8x8xf32>
    %80 = vector.extract_strided_slice %12 {offsets = [0, 88], sizes = [8, 8], strides = [1, 1]} : vector<8x96xf32> to vector<8x8xf32>
    %81 = tpu.transpose %79, [1, 0] : vector<8x8xf32> -> vector<8x8xf32>
    %cst_32 = arith.constant dense<0.000000e+00> : vector<8x8xf32>
    %82 = tpu.matmul %78, %81, %cst_32 {dimension_numbers = #tpu.dot_dimension_numbers<[1], [0], [0], [1], [0, 0, 1, 1], [], []>} : vector<8x8xf32>, vector<8x8xf32>, vector<8x8xf32> -> vector<8x8xf32>
    %83 = vector.broadcast %5 : vector<1x8xf32> to vector<8x8xf32>
    %84 = arith.addf %82, %83 : vector<8x8xf32>
    %cst_33 = arith.constant dense<0xFF800000> : vector<8xf32>
    %85 = vector.multi_reduction <maximumf>, %84, %cst_33 [1] : vector<8x8xf32> to vector<8xf32>
    %86 = vector.shape_cast %85 : vector<8xf32> to vector<8x1xf32>
    %87 = vector.broadcast %86 : vector<8x1xf32> to vector<8x8xf32>
    %88 = arith.subf %84, %87 : vector<8x8xf32>
    %89 = math.exp %88 : vector<8x8xf32>
    %cst_34 = arith.constant dense<0.000000e+00> : vector<8xf32>
    %90 = vector.multi_reduction <add>, %89, %cst_34 [1] : vector<8x8xf32> to vector<8xf32>
    %91 = vector.shape_cast %90 : vector<8xf32> to vector<8x1xf32>
    %92 = vector.broadcast %91 : vector<8x1xf32> to vector<8x8xf32>
    %93 = arith.divf %89, %92 : vector<8x8xf32>
    %cst_35 = arith.constant dense<0.000000e+00> : vector<8x8xf32>
    %94 = tpu.matmul %93, %80, %cst_35 {dimension_numbers = #tpu.dot_dimension_numbers<[1], [0], [0], [1], [0, 0, 1, 1], [], []>} : vector<8x8xf32>, vector<8x8xf32>, vector<8x8xf32> -> vector<8x8xf32>
    %95 = vector.extract_strided_slice %14 {offsets = [24, 0], sizes = [8, 32], strides = [1, 1]} : vector<32x32xf32> to vector<8x32xf32>
    %cst_36 = arith.constant dense<0.000000e+00> : vector<8x32xf32>
    %96 = tpu.matmul %94, %95, %cst_36 {dimension_numbers = #tpu.dot_dimension_numbers<[1], [0], [0], [1], [0, 0, 1, 1], [], []>} : vector<8x8xf32>, vector<8x32xf32>, vector<8x32xf32> -> vector<8x32xf32>
    %97 = arith.addf %77, %96 : vector<8x32xf32>
    %98 = arith.addf %97, %3 : vector<8x32xf32>
    %c0_37 = arith.constant 0 : index
    %c0_38 = arith.constant 0 : index
    %c0_39 = arith.constant 0 : index
    %99 = vector.load %arg10[%c0_37, %c0_38, %c0_39] : memref<1x1x32xf32, #tpu.memory_space<vmem>>, vector<1x1x32xf32>
    %100 = vector.shape_cast %99 : vector<1x1x32xf32> to vector<1x32xf32>
    %c0_40 = arith.constant 0 : index
    %c0_41 = arith.constant 0 : index
    %c0_42 = arith.constant 0 : index
    %101 = vector.load %arg11[%c0_40, %c0_41, %c0_42] : memref<1x1x32xf32, #tpu.memory_space<vmem>>, vector<1x1x32xf32>
    %102 = vector.shape_cast %101 : vector<1x1x32xf32> to vector<1x32xf32>
    %cst_43 = arith.constant dense<0.000000e+00> : vector<8xf32>
    %103 = vector.multi_reduction <add>, %98, %cst_43 [1] : vector<8x32xf32> to vector<8xf32>
    %104 = vector.shape_cast %103 : vector<8xf32> to vector<8x1xf32>
    %cst_44 = arith.constant 3.200000e+01 : f32
    %105 = vector.broadcast %cst_44 : f32 to vector<8x1xf32>
    %106 = arith.divf %104, %105 : vector<8x1xf32>
    %107 = vector.broadcast %106 : vector<8x1xf32> to vector<8x32xf32>
    %108 = arith.subf %98, %107 : vector<8x32xf32>
    %109 = arith.mulf %108, %108 : vector<8x32xf32>
    %cst_45 = arith.constant dense<0.000000e+00> : vector<8xf32>
    %110 = vector.multi_reduction <add>, %109, %cst_45 [1] : vector<8x32xf32> to vector<8xf32>
    %111 = vector.shape_cast %110 : vector<8xf32> to vector<8x1xf32>
    %cst_46 = arith.constant 3.200000e+01 : f32
    %112 = vector.broadcast %cst_46 : f32 to vector<8x1xf32>
    %113 = arith.divf %111, %112 : vector<8x1xf32>
    %cst_47 = arith.constant 9.99999974E-6 : f32
    %114 = vector.broadcast %cst_47 : f32 to vector<8x1xf32>
    %115 = arith.addf %113, %114 : vector<8x1xf32>
    %116 = math.rsqrt %115 : vector<8x1xf32>
    %117 = vector.broadcast %116 : vector<8x1xf32> to vector<8x32xf32>
    %118 = arith.mulf %108, %117 : vector<8x32xf32>
    %119 = vector.broadcast %100 : vector<1x32xf32> to vector<8x32xf32>
    %120 = arith.mulf %118, %119 : vector<8x32xf32>
    %121 = vector.broadcast %102 : vector<1x32xf32> to vector<8x32xf32>
    %122 = arith.addf %120, %121 : vector<8x32xf32>
    %c0_48 = arith.constant 0 : index
    %c0_49 = arith.constant 0 : index
    %c0_50 = arith.constant 0 : index
    %123 = vector.load %arg12[%c0_48, %c0_49, %c0_50] : memref<1x32x64xf32, #tpu.memory_space<vmem>>, vector<1x32x64xf32>
    %124 = vector.shape_cast %123 : vector<1x32x64xf32> to vector<32x64xf32>
    %cst_51 = arith.constant dense<0.000000e+00> : vector<8x64xf32>
    %125 = tpu.matmul %122, %124, %cst_51 {dimension_numbers = #tpu.dot_dimension_numbers<[1], [0], [0], [1], [0, 0, 1, 1], [], []>} : vector<8x32xf32>, vector<32x64xf32>, vector<8x64xf32> -> vector<8x64xf32>
    %c0_52 = arith.constant 0 : index
    %c0_53 = arith.constant 0 : index
    %c0_54 = arith.constant 0 : index
    %126 = vector.load %arg13[%c0_52, %c0_53, %c0_54] : memref<1x1x64xf32, #tpu.memory_space<vmem>>, vector<1x1x64xf32>
    %127 = vector.shape_cast %126 : vector<1x1x64xf32> to vector<1x64xf32>
    %128 = vector.broadcast %127 : vector<1x64xf32> to vector<8x64xf32>
    %129 = arith.addf %125, %128 : vector<8x64xf32>
    %130 = arith.mulf %129, %129 : vector<8x64xf32>
    %131 = arith.mulf %129, %130 : vector<8x64xf32>
    %cst_55 = arith.constant 4.471500e-02 : f32
    %132 = vector.broadcast %cst_55 : f32 to vector<8x64xf32>
    %133 = arith.mulf %132, %131 : vector<8x64xf32>
    %134 = arith.addf %129, %133 : vector<8x64xf32>
    %cst_56 = arith.constant 0.797884583 : f32
    %135 = vector.broadcast %cst_56 : f32 to vector<8x64xf32>
    %136 = arith.mulf %135, %134 : vector<8x64xf32>
    %137 = math.tanh %136 : vector<8x64xf32>
    %cst_57 = arith.constant 1.000000e+00 : f32
    %138 = vector.broadcast %cst_57 : f32 to vector<8x64xf32>
    %139 = arith.addf %138, %137 : vector<8x64xf32>
    %cst_58 = arith.constant 5.000000e-01 : f32
    %140 = vector.broadcast %cst_58 : f32 to vector<8x64xf32>
    %141 = arith.mulf %140, %139 : vector<8x64xf32>
    %142 = arith.mulf %129, %141 : vector<8x64xf32>
    %c0_59 = arith.constant 0 : index
    %c0_60 = arith.constant 0 : index
    %c0_61 = arith.constant 0 : index
    %143 = vector.load %arg14[%c0_59, %c0_60, %c0_61] : memref<1x64x32xf32, #tpu.memory_space<vmem>>, vector<1x64x32xf32>
    %144 = vector.shape_cast %143 : vector<1x64x32xf32> to vector<64x32xf32>
    %cst_62 = arith.constant dense<0.000000e+00> : vector<8x32xf32>
    %145 = tpu.matmul %142, %144, %cst_62 {dimension_numbers = #tpu.dot_dimension_numbers<[1], [0], [0], [1], [0, 0, 1, 1], [], []>} : vector<8x64xf32>, vector<64x32xf32>, vector<8x32xf32> -> vector<8x32xf32>
    %c0_63 = arith.constant 0 : index
    %c0_64 = arith.constant 0 : index
    %c0_65 = arith.constant 0 : index
    %146 = vector.load %arg15[%c0_63, %c0_64, %c0_65] : memref<1x1x32xf32, #tpu.memory_space<vmem>>, vector<1x1x32xf32>
    %147 = vector.shape_cast %146 : vector<1x1x32xf32> to vector<1x32xf32>
    %148 = vector.broadcast %147 : vector<1x32xf32> to vector<8x32xf32>
    %149 = arith.addf %145, %148 : vector<8x32xf32>
    %150 = arith.addf %149, %122 : vector<8x32xf32>
    %c0_66 = arith.constant 0 : index
    %c0_67 = arith.constant 0 : index
    %c0_68 = arith.constant 0 : index
    %151 = vector.load %arg16[%c0_66, %c0_67, %c0_68] : memref<1x1x32xf32, #tpu.memory_space<vmem>>, vector<1x1x32xf32>
    %152 = vector.shape_cast %151 : vector<1x1x32xf32> to vector<1x32xf32>
    %c0_69 = arith.constant 0 : index
    %c0_70 = arith.constant 0 : index
    %c0_71 = arith.constant 0 : index
    %153 = vector.load %arg17[%c0_69, %c0_70, %c0_71] : memref<1x1x32xf32, #tpu.memory_space<vmem>>, vector<1x1x32xf32>
    %154 = vector.shape_cast %153 : vector<1x1x32xf32> to vector<1x32xf32>
    %cst_72 = arith.constant dense<0.000000e+00> : vector<8xf32>
    %155 = vector.multi_reduction <add>, %150, %cst_72 [1] : vector<8x32xf32> to vector<8xf32>
    %156 = vector.shape_cast %155 : vector<8xf32> to vector<8x1xf32>
    %cst_73 = arith.constant 3.200000e+01 : f32
    %157 = vector.broadcast %cst_73 : f32 to vector<8x1xf32>
    %158 = arith.divf %156, %157 : vector<8x1xf32>
    %159 = vector.broadcast %158 : vector<8x1xf32> to vector<8x32xf32>
    %160 = arith.subf %150, %159 : vector<8x32xf32>
    %161 = arith.mulf %160, %160 : vector<8x32xf32>
    %cst_74 = arith.constant dense<0.000000e+00> : vector<8xf32>
    %162 = vector.multi_reduction <add>, %161, %cst_74 [1] : vector<8x32xf32> to vector<8xf32>
    %163 = vector.shape_cast %162 : vector<8xf32> to vector<8x1xf32>
    %cst_75 = arith.constant 3.200000e+01 : f32
    %164 = vector.broadcast %cst_75 : f32 to vector<8x1xf32>
    %165 = arith.divf %163, %164 : vector<8x1xf32>
    %cst_76 = arith.constant 9.99999974E-6 : f32
    %166 = vector.broadcast %cst_76 : f32 to vector<8x1xf32>
    %167 = arith.addf %165, %166 : vector<8x1xf32>
    %168 = math.rsqrt %167 : vector<8x1xf32>
    %169 = vector.broadcast %168 : vector<8x1xf32> to vector<8x32xf32>
    %170 = arith.mulf %160, %169 : vector<8x32xf32>
    %171 = vector.broadcast %152 : vector<1x32xf32> to vector<8x32xf32>
    %172 = arith.mulf %170, %171 : vector<8x32xf32>
    %173 = vector.broadcast %154 : vector<1x32xf32> to vector<8x32xf32>
    %174 = arith.addf %172, %173 : vector<8x32xf32>
    %c0_77 = arith.constant 0 : index
    %c0_78 = arith.constant 0 : index
    %175 = vector.load %arg23[%c0_77, %c0_78] : memref<8x32xf32, #tpu.memory_space<vmem>>, vector<8x32xf32>
    tpu.vector_store %arg23[%c0_77, %c0_78], %174 {strides = array<i32>} : memref<8x32xf32, #tpu.memory_space<vmem>>, vector<8x32xf32>,
    %c1_i32 = arith.constant 1 : i32
    %176 = arith.cmpi eq, %arg1, %c1_i32 : i32
    %177 = arith.extui %176 : i1 to i32
    %c0_i32_79 = arith.constant 0 : i32
    %178 = arith.cmpi ne, %177, %c0_i32_79 : i32
    scf.if %178 {
      %179 = vector.extract_strided_slice %174 {offsets = [0, 0], sizes = [1, 32], strides = [1, 1]} : vector<8x32xf32> to vector<1x32xf32>
      %c0_80 = arith.constant 0 : index
      %c0_81 = arith.constant 0 : index
      %180 = vector.load %arg18[%c0_80, %c0_81] : memref<32x16xf32, #tpu.memory_space<vmem>>, vector<32x16xf32>
      %cst_82 = arith.constant dense<0.000000e+00> : vector<1x16xf32>
      %181 = tpu.matmul %179, %180, %cst_82 {dimension_numbers = #tpu.dot_dimension_numbers<[1], [0], [0], [1], [0, 0, 1, 1], [], []>} : vector<1x32xf32>, vector<32x16xf32>, vector<1x16xf32> -> vector<1x16xf32>
      %c0_83 = arith.constant 0 : index
      %c0_84 = arith.constant 0 : index
      %182 = vector.load %arg19[%c0_83, %c0_84] : memref<1x16xf32, #tpu.memory_space<vmem>>, vector<1x16xf32>
      %183 = arith.addf %181, %182 : vector<1x16xf32>
      %cst_85 = arith.constant 0.000000e+00 : f32
      %184 = vector.broadcast %cst_85 : f32 to vector<1x16xf32>
      %185 = arith.maximumf %183, %184 : vector<1x16xf32>
      %c0_86 = arith.constant 0 : index
      %c0_87 = arith.constant 0 : index
      %186 = vector.load %arg20[%c0_86, %c0_87] : memref<16x2xf32, #tpu.memory_space<vmem>>, vector<16x2xf32>
      %cst_88 = arith.constant dense<0.000000e+00> : vector<1x2xf32>
      %187 = tpu.matmul %185, %186, %cst_88 {dimension_numbers = #tpu.dot_dimension_numbers<[1], [0], [0], [1], [0, 0, 1, 1], [], []>} : vector<1x16xf32>, vector<16x2xf32>, vector<1x2xf32> -> vector<1x2xf32>
      %c0_89 = arith.constant 0 : index
      %c0_90 = arith.constant 0 : index
      %188 = vector.load %arg21[%c0_89, %c0_90] : memref<1x2xf32, #tpu.memory_space<vmem>>, vector<1x2xf32>
      %189 = arith.addf %187, %188 : vector<1x2xf32>
      %c0_91 = arith.constant 0 : index
      %c0_92 = arith.constant 0 : index
      %c0_93 = arith.constant 0 : index
      %190 = vector.load %arg22[%c0_91, %c0_92, %c0_93] : memref<1x1x2xf32, #tpu.memory_space<vmem>>, vector<1x1x2xf32>
      %191 = vector.shape_cast %190 : vector<1x1x2xf32> to vector<1x2xf32>
      %192 = vector.shape_cast %189 : vector<1x2xf32> to vector<1x1x2xf32>
      tpu.vector_store %arg22[%c0_91, %c0_92, %c0_93], %192 {strides = array<i32>} : memref<1x1x2xf32, #tpu.memory_space<vmem>>, vector<1x1x2xf32>,
    } else {
    }
    return
  }
  func.func @transform_0(%arg0: i32, %arg1: i32) -> (i32, i32, i32) {
    %c0_i32 = arith.constant 0 : i32
    %c0_i32_0 = arith.constant 0 : i32
    %c0_i32_1 = arith.constant 0 : i32
    return %arg0, %c0_i32, %c0_i32_0 : i32, i32, i32
  }
  func.func @transform_1(%arg0: i32, %arg1: i32) -> (i32, i32, i32) {
    %c0_i32 = arith.constant 0 : i32
    %c0_i32_0 = arith.constant 0 : i32
    %c0_i32_1 = arith.constant 0 : i32
    return %arg0, %c0_i32, %c0_i32_0 : i32, i32, i32
  }
  func.func @transform_2(%arg0: i32, %arg1: i32) -> (i32, i32) {
    %c0_i32 = arith.constant 0 : i32
    %c0_i32_0 = arith.constant 0 : i32
    %c0_i32_1 = arith.constant 0 : i32
    return %c0_i32, %c0_i32_0 : i32, i32
  }
  func.func @transform_3(%arg0: i32, %arg1: i32) -> (i32, i32) {
    %c0_i32 = arith.constant 0 : i32
    %c0_i32_0 = arith.constant 0 : i32
    %c0_i32_1 = arith.constant 0 : i32
    return %c0_i32, %c0_i32_0 : i32, i32
  }
  func.func @transform_4(%arg0: i32, %arg1: i32) -> (i32, i32, i32) {
    %c0_i32 = arith.constant 0 : i32
    %c0_i32_0 = arith.constant 0 : i32
    %c0_i32_1 = arith.constant 0 : i32
    return %arg1, %c0_i32, %c0_i32_0 : i32, i32, i32
  }
  func.func @transform_5(%arg0: i32, %arg1: i32) -> (i32, i32, i32) {
    %c0_i32 = arith.constant 0 : i32
    %c0_i32_0 = arith.constant 0 : i32
    %c0_i32_1 = arith.constant 0 : i32
    return %arg1, %c0_i32, %c0_i32_0 : i32, i32, i32
  }
  func.func @transform_6(%arg0: i32, %arg1: i32) -> (i32, i32, i32) {
    %c0_i32 = arith.constant 0 : i32
    %c0_i32_0 = arith.constant 0 : i32
    %c0_i32_1 = arith.constant 0 : i32
    return %arg1, %c0_i32, %c0_i32_0 : i32, i32, i32
  }
  func.func @transform_7(%arg0: i32, %arg1: i32) -> (i32, i32, i32) {
    %c0_i32 = arith.constant 0 : i32
    %c0_i32_0 = arith.constant 0 : i32
    %c0_i32_1 = arith.constant 0 : i32
    return %arg1, %c0_i32, %c0_i32_0 : i32, i32, i32
  }
  func.func @transform_8(%arg0: i32, %arg1: i32) -> (i32, i32, i32) {
    %c0_i32 = arith.constant 0 : i32
    %c0_i32_0 = arith.constant 0 : i32
    %c0_i32_1 = arith.constant 0 : i32
    return %arg1, %c0_i32, %c0_i32_0 : i32, i32, i32
  }
  func.func @transform_9(%arg0: i32, %arg1: i32) -> (i32, i32, i32) {
    %c0_i32 = arith.constant 0 : i32
    %c0_i32_0 = arith.constant 0 : i32
    %c0_i32_1 = arith.constant 0 : i32
    return %arg1, %c0_i32, %c0_i32_0 : i32, i32, i32
  }
  func.func @transform_10(%arg0: i32, %arg1: i32) -> (i32, i32, i32) {
    %c0_i32 = arith.constant 0 : i32
    %c0_i32_0 = arith.constant 0 : i32
    %c0_i32_1 = arith.constant 0 : i32
    return %arg1, %c0_i32, %c0_i32_0 : i32, i32, i32
  }
  func.func @transform_11(%arg0: i32, %arg1: i32) -> (i32, i32, i32) {
    %c0_i32 = arith.constant 0 : i32
    %c0_i32_0 = arith.constant 0 : i32
    %c0_i32_1 = arith.constant 0 : i32
    return %arg1, %c0_i32, %c0_i32_0 : i32, i32, i32
  }
  func.func @transform_12(%arg0: i32, %arg1: i32) -> (i32, i32, i32) {
    %c0_i32 = arith.constant 0 : i32
    %c0_i32_0 = arith.constant 0 : i32
    %c0_i32_1 = arith.constant 0 : i32
    return %arg1, %c0_i32, %c0_i32_0 : i32, i32, i32
  }
  func.func @transform_13(%arg0: i32, %arg1: i32) -> (i32, i32, i32) {
    %c0_i32 = arith.constant 0 : i32
    %c0_i32_0 = arith.constant 0 : i32
    %c0_i32_1 = arith.constant 0 : i32
    return %arg1, %c0_i32, %c0_i32_0 : i32, i32, i32
  }
  func.func @transform_14(%arg0: i32, %arg1: i32) -> (i32, i32, i32) {
    %c0_i32 = arith.constant 0 : i32
    %c0_i32_0 = arith.constant 0 : i32
    %c0_i32_1 = arith.constant 0 : i32
    return %arg1, %c0_i32, %c0_i32_0 : i32, i32, i32
  }
  func.func @transform_15(%arg0: i32, %arg1: i32) -> (i32, i32, i32) {
    %c0_i32 = arith.constant 0 : i32
    %c0_i32_0 = arith.constant 0 : i32
    %c0_i32_1 = arith.constant 0 : i32
    return %arg1, %c0_i32, %c0_i32_0 : i32, i32, i32
  }
  func.func @transform_16(%arg0: i32, %arg1: i32) -> (i32, i32) {
    %c0_i32 = arith.constant 0 : i32
    %c0_i32_0 = arith.constant 0 : i32
    %c0_i32_1 = arith.constant 0 : i32
    return %c0_i32, %c0_i32_0 : i32, i32
  }
  func.func @transform_17(%arg0: i32, %arg1: i32) -> (i32, i32) {
    %c0_i32 = arith.constant 0 : i32
    %c0_i32_0 = arith.constant 0 : i32
    %c0_i32_1 = arith.constant 0 : i32
    return %c0_i32, %c0_i32_0 : i32, i32
  }
  func.func @transform_18(%arg0: i32, %arg1: i32) -> (i32, i32) {
    %c0_i32 = arith.constant 0 : i32
    %c0_i32_0 = arith.constant 0 : i32
    %c0_i32_1 = arith.constant 0 : i32
    return %c0_i32, %c0_i32_0 : i32, i32
  }
  func.func @transform_19(%arg0: i32, %arg1: i32) -> (i32, i32) {
    %c0_i32 = arith.constant 0 : i32
    %c0_i32_0 = arith.constant 0 : i32
    %c0_i32_1 = arith.constant 0 : i32
    return %c0_i32, %c0_i32_0 : i32, i32
  }
  func.func @transform_20(%arg0: i32, %arg1: i32) -> (i32, i32, i32) {
    %c0_i32 = arith.constant 0 : i32
    %c0_i32_0 = arith.constant 0 : i32
    %c0_i32_1 = arith.constant 0 : i32
    return %arg0, %c0_i32, %c0_i32_0 : i32, i32, i32
  }
}

</mosaic_0001>

<llo_original>
// kernel: defect_prediction_forward.1
$region0: #{defect_prediction_forward.1}
  #allocation0 [shape = 'u32[]', space=smem, size = 0x4, offset = 0x4, fixed_abs, tag = 'smem constant byte address 0x4 - core index']
  #allocation1 [shape = 'u32[144,128]{1,0:T(1,128)}', space=vmem, size = 0x12000, scoped, tag = 'internal scratch']
  #allocation2 [shape = 'f32[8,32]{1,0:T(8,128)}', space=vmem, size = 0x1000, scoped, tag = 'scratch operand']
  %s0 = inlined_call_operand.vmem [shape: f32[2,8,32], index: 0, kind: input, shape index: {}]
  %s1 = inlined_call_operand.vmem [shape: f32[2,1,8], index: 1, kind: input, shape index: {}]
  %s2 = inlined_call_operand.vmem [shape: f32[1,32], index: 2, kind: input, shape index: {}]
  %s3 = inlined_call_operand.vmem [shape: f32[1,32], index: 3, kind: input, shape index: {}]
  %s4 = inlined_call_operand.vmem [shape: f32[2,32,96], index: 4, kind: input, shape index: {}]
  %s5 = inlined_call_operand.vmem [shape: f32[2,1,96], index: 5, kind: input, shape index: {}]
  %s6 = inlined_call_operand.vmem [shape: f32[2,32,32], index: 6, kind: input, shape index: {}]
  %s7 = inlined_call_operand.vmem [shape: f32[2,1,32], index: 7, kind: input, shape index: {}]
  %s8 = inlined_call_operand.vmem [shape: f32[2,1,32], index: 8, kind: input, shape index: {}]
  %s9 = inlined_call_operand.vmem [shape: f32[2,1,32], index: 9, kind: input, shape index: {}]
  %s10 = inlined_call_operand.vmem [shape: f32[2,32,64], index: 10, kind: input, shape index: {}]
  %s11 = inlined_call_operand.vmem [shape: f32[2,1,64], index: 11, kind: input, shape index: {}]
  %s12 = inlined_call_operand.vmem [shape: f32[2,64,32], index: 12, kind: input, shape index: {}]
  %s13 = inlined_call_operand.vmem [shape: f32[2,1,32], index: 13, kind: input, shape index: {}]
  %s14 = inlined_call_operand.vmem [shape: f32[2,1,32], index: 14, kind: input, shape index: {}]
  %s15 = inlined_call_operand.vmem [shape: f32[2,1,32], index: 15, kind: input, shape index: {}]
  %s16 = inlined_call_operand.vmem [shape: f32[32,16], index: 16, kind: input, shape index: {}]
  %s17 = inlined_call_operand.vmem [shape: f32[1,16], index: 17, kind: input, shape index: {}]
  %s18 = inlined_call_operand.vmem [shape: f32[16,2], index: 18, kind: input, shape index: {}]
  %s19 = inlined_call_operand.vmem [shape: f32[1,2], index: 19, kind: input, shape index: {}]
  %s20 = inlined_call_operand.hbm [shape: f32[2,1,2], index: 20, kind: output, shape index: {}]
  %s21 = sld [smem:[#allocation0]]
  $region121: #{defect_prediction_forward.1} parent=0
    _
  %s23 = ssub.s32 1, %s21
  %s24 = scalar_select 0, %s23, %s21
  $region1: #{defect_prediction_forward.1} parent=0
    #allocation3 [shape = 'u8[1024]{0}', space=vmem, size = 0x400, scoped, tag = 'output window, operand 0']
    #allocation4 [shape = 's32[2]{0}', space=sflag, size = 0x8, scoped, tag = 'scoped memory for defect_prediction_forward.1']
    %25 = vsyncpa [#allocation4], 0
    %s26 = scalar_lea.sflag [#allocation4], 1
    %27 = vsyncpa %s26, 0
    loop: start=0, step=1, limit=6
    $region2: #{defect_prediction_forward.1} parent=1 // loop_pre_header
      _
    $region3: #{defect_prediction_forward.1} parent=1 // loop_header
      %s29 = sphi 0, %s33
      %p30 = scmp.ge.s32.totalorder %s29, 6
      %s36 = sphi 0, %s48
      %s37 = sphi 0, %s44
      %s38 = sphi 0, %s36
      %s39 = sphi 0, %s37
      %s40 = sphi 0, %s38
      %s41 = sphi 0, %s39
      %s51 = sphi 0, %s53
      %s54 = sphi 0, %s51
      %s55 = sphi 0, %s54
      %s71 = sphi 0, %s55
      %s77 = sphi 0, %s79
      %s80 = sphi 0, %s77
      %s81 = sphi 0, %s80
      %s97 = sphi 0, %s81
      %s101 = sphi 0, %s101
      %s103 = sphi 0, %s101
      %s104 = sphi 0, %s103
      %s118 = sphi 0, %s104
      %s122 = sphi 0, %s122
      %s124 = sphi 0, %s122
      %s125 = sphi 0, %s124
      %s139 = sphi 0, %s125
      %s145 = sphi 0, %s147
      %s148 = sphi 0, %s145
      %s149 = sphi 0, %s148
      %s165 = sphi 0, %s149
      %s171 = sphi 0, %s173
      %s174 = sphi 0, %s171
      %s175 = sphi 0, %s174
      %s191 = sphi 0, %s175
      %s197 = sphi 0, %s199
      %s200 = sphi 0, %s197
      %s201 = sphi 0, %s200
      %s217 = sphi 0, %s201
      %s223 = sphi 0, %s225
      %s226 = sphi 0, %s223
      %s227 = sphi 0, %s226
      %s243 = sphi 0, %s227
      %s249 = sphi 0, %s251
      %s252 = sphi 0, %s249
      %s253 = sphi 0, %s252
      %s269 = sphi 0, %s253
      %s275 = sphi 0, %s277
      %s278 = sphi 0, %s275
      %s279 = sphi 0, %s278
      %s295 = sphi 0, %s279
      %s301 = sphi 0, %s303
      %s304 = sphi 0, %s301
      %s305 = sphi 0, %s304
      %s321 = sphi 0, %s305
      %s327 = sphi 0, %s329
      %s330 = sphi 0, %s327
      %s331 = sphi 0, %s330
      %s347 = sphi 0, %s331
      %s353 = sphi 0, %s355
      %s356 = sphi 0, %s353
      %s357 = sphi 0, %s356
      %s373 = sphi 0, %s357
      %s379 = sphi 0, %s381
      %s382 = sphi 0, %s379
      %s383 = sphi 0, %s382
      %s399 = sphi 0, %s383
      %s405 = sphi 0, %s407
      %s408 = sphi 0, %s405
      %s409 = sphi 0, %s408
      %s425 = sphi 0, %s409
      %s431 = sphi 0, %s433
      %s434 = sphi 0, %s431
      %s435 = sphi 0, %s434
      %s451 = sphi 0, %s435
      %s455 = sphi 0, %s455
      %s457 = sphi 0, %s455
      %s458 = sphi 0, %s457
      %s472 = sphi 0, %s458
      %s476 = sphi 0, %s476
      %s478 = sphi 0, %s476
      %s479 = sphi 0, %s478
      %s493 = sphi 0, %s479
      %s497 = sphi 0, %s497
      %s499 = sphi 0, %s497
      %s500 = sphi 0, %s499
      %s514 = sphi 0, %s500
      %s518 = sphi 0, %s518
      %s520 = sphi 0, %s518
      %s521 = sphi 0, %s520
      %s535 = sphi 0, %s521
      %s541 = sphi 0, %s543
      %s544 = sphi 0, %s541
      %s545 = sphi 0, %s544
      %s561 = sphi 0, %s545
    $region4: #{defect_prediction_forward.1} parent=1 // loop_header_branch
      %32 = sbr.rel (%p30) target = $region8
    $region5: #{defect_prediction_forward.1} parent=1 // loop_body
      %s34 = ssub.s32 %s29, 1
      %s35 = ssub.s32 %s29, 2
      %s42 = sadd.s32 1, %s37
      %p43 = scmp.ge.s32.totalorder %s42, 2
      %s44 = scalar_select %p43, 0, %s42
      %s45 = sadd.s32 1, %s36
      %s46 = scalar_select %p43, %s45, %s36
      %p47 = scmp.ge.s32.totalorder %s46, 2
      %s48 = scalar_select %p47, 0, %s46
      %s49 = ssub.s32 %s36, %s48
      %p50 = scmp.eq.s32.totalorder %s49, 0
      %s52 = sadd.s32 %s51, 1
      %s53 = scalar_select %p50, %s51, %s52
      %p56 = pneg %p50
      %p57 = scmp.eq.s32.totalorder %s29, 3
      %p58 = por %p56, %p57
      %p59 = scmp.ne.s32.totalorder %s51, %s54
      %p60 = scmp.eq.s32.totalorder %s29, 0
      %p61 = por %p59, %p60
      %p62 = scmp.ne.s32.totalorder %s51, %s54
      %p63 = scmp.eq.s32.totalorder %s34, 3
      %p64 = por %p62, %p63
      %p65 = scmp.ne.s32.totalorder %s54, %s55
      %p66 = scmp.eq.s32.totalorder %s34, 0
      %p67 = por %p65, %p66
      %p68 = scmp.ne.s32.totalorder %s54, %s55
      %p69 = scmp.eq.s32.totalorder %s35, 3
      %p70 = por %p68, %p69
      %p72 = scmp.ne.s32.totalorder %s55, %s71
      %p73 = scmp.eq.s32.totalorder %s35, 0
      %p74 = por %p72, %p73
      %s75 = ssub.s32 %s36, %s48
      %p76 = scmp.eq.s32.totalorder %s75, 0
      %s78 = sadd.s32 %s77, 1
      %s79 = scalar_select %p76, %s77, %s78
      %p82 = pneg %p76
      %p83 = scmp.eq.s32.totalorder %s29, 3
      %p84 = por %p82, %p83
      %p85 = scmp.ne.s32.totalorder %s77, %s80
      %p86 = scmp.eq.s32.totalorder %s29, 0
      %p87 = por %p85, %p86
      %p88 = scmp.ne.s32.totalorder %s77, %s80
      %p89 = scmp.eq.s32.totalorder %s34, 3
      %p90 = por %p88, %p89
      %p91 = scmp.ne.s32.totalorder %s80, %s81
      %p92 = scmp.eq.s32.totalorder %s34, 0
      %p93 = por %p91, %p92
      %p94 = scmp.ne.s32.totalorder %s80, %s81
      %p95 = scmp.eq.s32.totalorder %s35, 3
      %p96 = por %p94, %p95
      %p98 = scmp.ne.s32.totalorder %s81, %s97
      %p99 = scmp.eq.s32.totalorder %s35, 0
      %p100 = por %p98, %p99
      %s102 = sadd.s32 %s101, 1
      %p105 = scmp.eq.s32.totalorder %s29, 3
      %p106 = scmp.ne.s32.totalorder %s101, %s103
      %p107 = scmp.eq.s32.totalorder %s29, 0
      %p108 = por %p106, %p107
      %p109 = scmp.ne.s32.totalorder %s101, %s103
      %p110 = scmp.eq.s32.totalorder %s34, 3
      %p111 = por %p109, %p110
      %p112 = scmp.ne.s32.totalorder %s103, %s104
      %p113 = scmp.eq.s32.totalorder %s34, 0
      %p114 = por %p112, %p113
      %p115 = scmp.ne.s32.totalorder %s103, %s104
      %p116 = scmp.eq.s32.totalorder %s35, 3
      %p117 = por %p115, %p116
      %p119 = scmp.ne.s32.totalorder %s104, %s118
      %p120 = scmp.eq.s32.totalorder %s35, 0
      %p121 = por %p119, %p120
      %s123 = sadd.s32 %s122, 1
      %p126 = scmp.eq.s32.totalorder %s29, 3
      %p127 = scmp.ne.s32.totalorder %s122, %s124
      %p128 = scmp.eq.s32.totalorder %s29, 0
      %p129 = por %p127, %p128
      %p130 = scmp.ne.s32.totalorder %s122, %s124
      %p131 = scmp.eq.s32.totalorder %s34, 3
      %p132 = por %p130, %p131
      %p133 = scmp.ne.s32.totalorder %s124, %s125
      %p134 = scmp.eq.s32.totalorder %s34, 0
      %p135 = por %p133, %p134
      %p136 = scmp.ne.s32.totalorder %s124, %s125
      %p137 = scmp.eq.s32.totalorder %s35, 3
      %p138 = por %p136, %p137
      %p140 = scmp.ne.s32.totalorder %s125, %s139
      %p141 = scmp.eq.s32.totalorder %s35, 0
      %p142 = por %p140, %p141
      %s143 = ssub.s32 %s37, %s44
      %p144 = scmp.eq.s32.totalorder %s143, 0
      %s146 = sadd.s32 %s145, 1
      %s147 = scalar_select %p144, %s145, %s146
      %p150 = pneg %p144
      %p151 = scmp.eq.s32.totalorder %s29, 3
      %p152 = por %p150, %p151
      %p153 = scmp.ne.s32.totalorder %s145, %s148
      %p154 = scmp.eq.s32.totalorder %s29, 0
      %p155 = por %p153, %p154
      %p156 = scmp.ne.s32.totalorder %s145, %s148
      %p157 = scmp.eq.s32.totalorder %s34, 3
      %p158 = por %p156, %p157
      %p159 = scmp.ne.s32.totalorder %s148, %s149
      %p160 = scmp.eq.s32.totalorder %s34, 0
      %p161 = por %p159, %p160
      %p162 = scmp.ne.s32.totalorder %s148, %s149
      %p163 = scmp.eq.s32.totalorder %s35, 3
      %p164 = por %p162, %p163
      %p166 = scmp.ne.s32.totalorder %s149, %s165
      %p167 = scmp.eq.s32.totalorder %s35, 0
      %p168 = por %p166, %p167
      %s169 = ssub.s32 %s37, %s44
      %p170 = scmp.eq.s32.totalorder %s169, 0
      %s172 = sadd.s32 %s171, 1
      %s173 = scalar_select %p170, %s171, %s172
      %p176 = pneg %p170
      %p177 = scmp.eq.s32.totalorder %s29, 3
      %p178 = por %p176, %p177
      %p179 = scmp.ne.s32.totalorder %s171, %s174
      %p180 = scmp.eq.s32.totalorder %s29, 0
      %p181 = por %p179, %p180
      %p182 = scmp.ne.s32.totalorder %s171, %s174
      %p183 = scmp.eq.s32.totalorder %s34, 3
      %p184 = por %p182, %p183
      %p185 = scmp.ne.s32.totalorder %s174, %s175
      %p186 = scmp.eq.s32.totalorder %s34, 0
      %p187 = por %p185, %p186
      %p188 = scmp.ne.s32.totalorder %s174, %s175
      %p189 = scmp.eq.s32.totalorder %s35, 3
      %p190 = por %p188, %p189
      %p192 = scmp.ne.s32.totalorder %s175, %s191
      %p193 = scmp.eq.s32.totalorder %s35, 0
      %p194 = por %p192, %p193
      %s195 = ssub.s32 %s37, %s44
      %p196 = scmp.eq.s32.totalorder %s195, 0
      %s198 = sadd.s32 %s197, 1
      %s199 = scalar_select %p196, %s197, %s198
      %p202 = pneg %p196
      %p203 = scmp.eq.s32.totalorder %s29, 3
      %p204 = por %p202, %p203
      %p205 = scmp.ne.s32.totalorder %s197, %s200
      %p206 = scmp.eq.s32.totalorder %s29, 0
      %p207 = por %p205, %p206
      %p208 = scmp.ne.s32.totalorder %s197, %s200
      %p209 = scmp.eq.s32.totalorder %s34, 3
      %p210 = por %p208, %p209
      %p211 = scmp.ne.s32.totalorder %s200, %s201
      %p212 = scmp.eq.s32.totalorder %s34, 0
      %p213 = por %p211, %p212
      %p214 = scmp.ne.s32.totalorder %s200, %s201
      %p215 = scmp.eq.s32.totalorder %s35, 3
      %p216 = por %p214, %p215
      %p218 = scmp.ne.s32.totalorder %s201, %s217
      %p219 = scmp.eq.s32.totalorder %s35, 0
      %p220 = por %p218, %p219
      %s221 = ssub.s32 %s37, %s44
      %p222 = scmp.eq.s32.totalorder %s221, 0
      %s224 = sadd.s32 %s223, 1
      %s225 = scalar_select %p222, %s223, %s224
      %p228 = pneg %p222
      %p229 = scmp.eq.s32.totalorder %s29, 3
      %p230 = por %p228, %p229
      %p231 = scmp.ne.s32.totalorder %s223, %s226
      %p232 = scmp.eq.s32.totalorder %s29, 0
      %p233 = por %p231, %p232
      %p234 = scmp.ne.s32.totalorder %s223, %s226
      %p235 = scmp.eq.s32.totalorder %s34, 3
      %p236 = por %p234, %p235
      %p237 = scmp.ne.s32.totalorder %s226, %s227
      %p238 = scmp.eq.s32.totalorder %s34, 0
      %p239 = por %p237, %p238
      %p240 = scmp.ne.s32.totalorder %s226, %s227
      %p241 = scmp.eq.s32.totalorder %s35, 3
      %p242 = por %p240, %p241
      %p244 = scmp.ne.s32.totalorder %s227, %s243
      %p245 = scmp.eq.s32.totalorder %s35, 0
      %p246 = por %p244, %p245
      %s247 = ssub.s32 %s37, %s44
      %p248 = scmp.eq.s32.totalorder %s247, 0
      %s250 = sadd.s32 %s249, 1
      %s251 = scalar_select %p248, %s249, %s250
      %p254 = pneg %p248
      %p255 = scmp.eq.s32.totalorder %s29, 3
      %p256 = por %p254, %p255
      %p257 = scmp.ne.s32.totalorder %s249, %s252
      %p258 = scmp.eq.s32.totalorder %s29, 0
      %p259 = por %p257, %p258
      %p260 = scmp.ne.s32.totalorder %s249, %s252
      %p261 = scmp.eq.s32.totalorder %s34, 3
      %p262 = por %p260, %p261
      %p263 = scmp.ne.s32.totalorder %s252, %s253
      %p264 = scmp.eq.s32.totalorder %s34, 0
      %p265 = por %p263, %p264
      %p266 = scmp.ne.s32.totalorder %s252, %s253
      %p267 = scmp.eq.s32.totalorder %s35, 3
      %p268 = por %p266, %p267
      %p270 = scmp.ne.s32.totalorder %s253, %s269
      %p271 = scmp.eq.s32.totalorder %s35, 0
      %p272 = por %p270, %p271
      %s273 = ssub.s32 %s37, %s44
      %p274 = scmp.eq.s32.totalorder %s273, 0
      %s276 = sadd.s32 %s275, 1
      %s277 = scalar_select %p274, %s275, %s276
      %p280 = pneg %p274
      %p281 = scmp.eq.s32.totalorder %s29, 3
      %p282 = por %p280, %p281
      %p283 = scmp.ne.s32.totalorder %s275, %s278
      %p284 = scmp.eq.s32.totalorder %s29, 0
      %p285 = por %p283, %p284
      %p286 = scmp.ne.s32.totalorder %s275, %s278
      %p287 = scmp.eq.s32.totalorder %s34, 3
      %p288 = por %p286, %p287
      %p289 = scmp.ne.s32.totalorder %s278, %s279
      %p290 = scmp.eq.s32.totalorder %s34, 0
      %p291 = por %p289, %p290
      %p292 = scmp.ne.s32.totalorder %s278, %s279
      %p293 = scmp.eq.s32.totalorder %s35, 3
      %p294 = por %p292, %p293
      %p296 = scmp.ne.s32.totalorder %s279, %s295
      %p297 = scmp.eq.s32.totalorder %s35, 0
      %p298 = por %p296, %p297
      %s299 = ssub.s32 %s37, %s44
      %p300 = scmp.eq.s32.totalorder %s299, 0
      %s302 = sadd.s32 %s301, 1
      %s303 = scalar_select %p300, %s301, %s302
      %p306 = pneg %p300
      %p307 = scmp.eq.s32.totalorder %s29, 3
      %p308 = por %p306, %p307
      %p309 = scmp.ne.s32.totalorder %s301, %s304
      %p310 = scmp.eq.s32.totalorder %s29, 0
      %p311 = por %p309, %p310
      %p312 = scmp.ne.s32.totalorder %s301, %s304
      %p313 = scmp.eq.s32.totalorder %s34, 3
      %p314 = por %p312, %p313
      %p315 = scmp.ne.s32.totalorder %s304, %s305
      %p316 = scmp.eq.s32.totalorder %s34, 0
      %p317 = por %p315, %p316
      %p318 = scmp.ne.s32.totalorder %s304, %s305
      %p319 = scmp.eq.s32.totalorder %s35, 3
      %p320 = por %p318, %p319
      %p322 = scmp.ne.s32.totalorder %s305, %s321
      %p323 = scmp.eq.s32.totalorder %s35, 0
      %p324 = por %p322, %p323
      %s325 = ssub.s32 %s37, %s44
      %p326 = scmp.eq.s32.totalorder %s325, 0
      %s328 = sadd.s32 %s327, 1
      %s329 = scalar_select %p326, %s327, %s328
      %p332 = pneg %p326
      %p333 = scmp.eq.s32.totalorder %s29, 3
      %p334 = por %p332, %p333
      %p335 = scmp.ne.s32.totalorder %s327, %s330
      %p336 = scmp.eq.s32.totalorder %s29, 0
      %p337 = por %p335, %p336
      %p338 = scmp.ne.s32.totalorder %s327, %s330
      %p339 = scmp.eq.s32.totalorder %s34, 3
      %p340 = por %p338, %p339
      %p341 = scmp.ne.s32.totalorder %s330, %s331
      %p342 = scmp.eq.s32.totalorder %s34, 0
      %p343 = por %p341, %p342
      %p344 = scmp.ne.s32.totalorder %s330, %s331
      %p345 = scmp.eq.s32.totalorder %s35, 3
      %p346 = por %p344, %p345
      %p348 = scmp.ne.s32.totalorder %s331, %s347
      %p349 = scmp.eq.s32.totalorder %s35, 0
      %p350 = por %p348, %p349
      %s351 = ssub.s32 %s37, %s44
      %p352 = scmp.eq.s32.totalorder %s351, 0
      %s354 = sadd.s32 %s353, 1
      %s355 = scalar_select %p352, %s353, %s354
      %p358 = pneg %p352
      %p359 = scmp.eq.s32.totalorder %s29, 3
      %p360 = por %p358, %p359
      %p361 = scmp.ne.s32.totalorder %s353, %s356
      %p362 = scmp.eq.s32.totalorder %s29, 0
      %p363 = por %p361, %p362
      %p364 = scmp.ne.s32.totalorder %s353, %s356
      %p365 = scmp.eq.s32.totalorder %s34, 3
      %p366 = por %p364, %p365
      %p367 = scmp.ne.s32.totalorder %s356, %s357
      %p368 = scmp.eq.s32.totalorder %s34, 0
      %p369 = por %p367, %p368
      %p370 = scmp.ne.s32.totalorder %s356, %s357
      %p371 = scmp.eq.s32.totalorder %s35, 3
      %p372 = por %p370, %p371
      %p374 = scmp.ne.s32.totalorder %s357, %s373
      %p375 = scmp.eq.s32.totalorder %s35, 0
      %p376 = por %p374, %p375
      %s377 = ssub.s32 %s37, %s44
      %p378 = scmp.eq.s32.totalorder %s377, 0
      %s380 = sadd.s32 %s379, 1
      %s381 = scalar_select %p378, %s379, %s380
      %p384 = pneg %p378
      %p385 = scmp.eq.s32.totalorder %s29, 3
      %p386 = por %p384, %p385
      %p387 = scmp.ne.s32.totalorder %s379, %s382
      %p388 = scmp.eq.s32.totalorder %s29, 0
      %p389 = por %p387, %p388
      %p390 = scmp.ne.s32.totalorder %s379, %s382
      %p391 = scmp.eq.s32.totalorder %s34, 3
      %p392 = por %p390, %p391
      %p393 = scmp.ne.s32.totalorder %s382, %s383
      %p394 = scmp.eq.s32.totalorder %s34, 0
      %p395 = por %p393, %p394
      %p396 = scmp.ne.s32.totalorder %s382, %s383
      %p397 = scmp.eq.s32.totalorder %s35, 3
      %p398 = por %p396, %p397
      %p400 = scmp.ne.s32.totalorder %s383, %s399
      %p401 = scmp.eq.s32.totalorder %s35, 0
      %p402 = por %p400, %p401
      %s403 = ssub.s32 %s37, %s44
      %p404 = scmp.eq.s32.totalorder %s403, 0
      %s406 = sadd.s32 %s405, 1
      %s407 = scalar_select %p404, %s405, %s406
      %p410 = pneg %p404
      %p411 = scmp.eq.s32.totalorder %s29, 3
      %p412 = por %p410, %p411
      %p413 = scmp.ne.s32.totalorder %s405, %s408
      %p414 = scmp.eq.s32.totalorder %s29, 0
      %p415 = por %p413, %p414
      %p416 = scmp.ne.s32.totalorder %s405, %s408
      %p417 = scmp.eq.s32.totalorder %s34, 3
      %p418 = por %p416, %p417
      %p419 = scmp.ne.s32.totalorder %s408, %s409
      %p420 = scmp.eq.s32.totalorder %s34, 0
      %p421 = por %p419, %p420
      %p422 = scmp.ne.s32.totalorder %s408, %s409
      %p423 = scmp.eq.s32.totalorder %s35, 3
      %p424 = por %p422, %p423
      %p426 = scmp.ne.s32.totalorder %s409, %s425
      %p427 = scmp.eq.s32.totalorder %s35, 0
      %p428 = por %p426, %p427
      %s429 = ssub.s32 %s37, %s44
      %p430 = scmp.eq.s32.totalorder %s429, 0
      %s432 = sadd.s32 %s431, 1
      %s433 = scalar_select %p430, %s431, %s432
      %p436 = pneg %p430
      %p437 = scmp.eq.s32.totalorder %s29, 3
      %p438 = por %p436, %p437
      %p439 = scmp.ne.s32.totalorder %s431, %s434
      %p440 = scmp.eq.s32.totalorder %s29, 0
      %p441 = por %p439, %p440
      %p442 = scmp.ne.s32.totalorder %s431, %s434
      %p443 = scmp.eq.s32.totalorder %s34, 3
      %p444 = por %p442, %p443
      %p445 = scmp.ne.s32.totalorder %s434, %s435
      %p446 = scmp.eq.s32.totalorder %s34, 0
      %p447 = por %p445, %p446
      %p448 = scmp.ne.s32.totalorder %s434, %s435
      %p449 = scmp.eq.s32.totalorder %s35, 3
      %p450 = por %p448, %p449
      %p452 = scmp.ne.s32.totalorder %s435, %s451
      %p453 = scmp.eq.s32.totalorder %s35, 0
      %p454 = por %p452, %p453
      %s456 = sadd.s32 %s455, 1
      %p459 = scmp.eq.s32.totalorder %s29, 3
      %p460 = scmp.ne.s32.totalorder %s455, %s457
      %p461 = scmp.eq.s32.totalorder %s29, 0
      %p462 = por %p460, %p461
      %p463 = scmp.ne.s32.totalorder %s455, %s457
      %p464 = scmp.eq.s32.totalorder %s34, 3
      %p465 = por %p463, %p464
      %p466 = scmp.ne.s32.totalorder %s457, %s458
      %p467 = scmp.eq.s32.totalorder %s34, 0
      %p468 = por %p466, %p467
      %p469 = scmp.ne.s32.totalorder %s457, %s458
      %p470 = scmp.eq.s32.totalorder %s35, 3
      %p471 = por %p469, %p470
      %p473 = scmp.ne.s32.totalorder %s458, %s472
      %p474 = scmp.eq.s32.totalorder %s35, 0
      %p475 = por %p473, %p474
      %s477 = sadd.s32 %s476, 1
      %p480 = scmp.eq.s32.totalorder %s29, 3
      %p481 = scmp.ne.s32.totalorder %s476, %s478
      %p482 = scmp.eq.s32.totalorder %s29, 0
      %p483 = por %p481, %p482
      %p484 = scmp.ne.s32.totalorder %s476, %s478
      %p485 = scmp.eq.s32.totalorder %s34, 3
      %p486 = por %p484, %p485
      %p487 = scmp.ne.s32.totalorder %s478, %s479
      %p488 = scmp.eq.s32.totalorder %s34, 0
      %p489 = por %p487, %p488
      %p490 = scmp.ne.s32.totalorder %s478, %s479
      %p491 = scmp.eq.s32.totalorder %s35, 3
      %p492 = por %p490, %p491
      %p494 = scmp.ne.s32.totalorder %s479, %s493
      %p495 = scmp.eq.s32.totalorder %s35, 0
      %p496 = por %p494, %p495
      %s498 = sadd.s32 %s497, 1
      %p501 = scmp.eq.s32.totalorder %s29, 3
      %p502 = scmp.ne.s32.totalorder %s497, %s499
      %p503 = scmp.eq.s32.totalorder %s29, 0
      %p504 = por %p502, %p503
      %p505 = scmp.ne.s32.totalorder %s497, %s499
      %p506 = scmp.eq.s32.totalorder %s34, 3
      %p507 = por %p505, %p506
      %p508 = scmp.ne.s32.totalorder %s499, %s500
      %p509 = scmp.eq.s32.totalorder %s34, 0
      %p510 = por %p508, %p509
      %p511 = scmp.ne.s32.totalorder %s499, %s500
      %p512 = scmp.eq.s32.totalorder %s35, 3
      %p513 = por %p511, %p512
      %p515 = scmp.ne.s32.totalorder %s500, %s514
      %p516 = scmp.eq.s32.totalorder %s35, 0
      %p517 = por %p515, %p516
      %s519 = sadd.s32 %s518, 1
      %p522 = scmp.eq.s32.totalorder %s29, 3
      %p523 = scmp.ne.s32.totalorder %s518, %s520
      %p524 = scmp.eq.s32.totalorder %s29, 0
      %p525 = por %p523, %p524
      %p526 = scmp.ne.s32.totalorder %s518, %s520
      %p527 = scmp.eq.s32.totalorder %s34, 3
      %p528 = por %p526, %p527
      %p529 = scmp.ne.s32.totalorder %s520, %s521
      %p530 = scmp.eq.s32.totalorder %s34, 0
      %p531 = por %p529, %p530
      %p532 = scmp.ne.s32.totalorder %s520, %s521
      %p533 = scmp.eq.s32.totalorder %s35, 3
      %p534 = por %p532, %p533
      %p536 = scmp.ne.s32.totalorder %s521, %s535
      %p537 = scmp.eq.s32.totalorder %s35, 0
      %p538 = por %p536, %p537
      %s539 = ssub.s32 %s36, %s48
      %p540 = scmp.eq.s32.totalorder %s539, 0
      %s542 = sadd.s32 %s541, 1
      %s543 = scalar_select %p540, %s541, %s542
      %p546 = pneg %p540
      %p547 = scmp.eq.s32.totalorder %s29, 3
      %p548 = por %p546, %p547
      %p549 = scmp.ne.s32.totalorder %s541, %s544
      %p550 = scmp.eq.s32.totalorder %s29, 0
      %p551 = por %p549, %p550
      %p552 = scmp.ne.s32.totalorder %s541, %s544
      %p553 = scmp.eq.s32.totalorder %s34, 3
      %p554 = por %p552, %p553
      %p555 = scmp.ne.s32.totalorder %s544, %s545
      %p556 = scmp.eq.s32.totalorder %s34, 0
      %p557 = por %p555, %p556
      %p558 = scmp.ne.s32.totalorder %s544, %s545
      %p559 = scmp.eq.s32.totalorder %s35, 3
      %p560 = por %p558, %p559
      %p562 = scmp.ne.s32.totalorder %s545, %s561
      %p563 = scmp.eq.s32.totalorder %s35, 0
      %p564 = por %p562, %p563
      %p565 = scmp.le.s32.totalorder 1, %s29
      %p566 = scmp.lt.s32.totalorder %s29, 5
      %p567 = pnand %p565, %p566
      %p568 = pneg %p567
      // Predicated region
      $region9: #{defect_prediction_forward.1} parent=5 // pred_check
        _
      $region10: #{defect_prediction_forward.1} parent=5 // pred_check_branch
        %570 = sbr.rel (%p567) target = $region12
      $region11: #{defect_prediction_forward.1} parent=5 // pred_region
        %s571 = ssub.s32 %s29, 1
        // Predicated region
        $region13: #{defect_prediction_forward.1} parent=11 // pred_check
          %p572 = pneg %p114
        $region14: #{defect_prediction_forward.1} parent=11 // pred_check_branch
          %574 = sbr.rel (%p572) target = $region16
        $region15: #{defect_prediction_forward.1} parent=11 // pred_region
          _
        $region16: #{defect_prediction_forward.1} parent=11 // pred_fallthru
          _
        // Predicated region
        $region17: #{defect_prediction_forward.1} parent=11 // pred_check
          %p575 = pneg %p135
        $region18: #{defect_prediction_forward.1} parent=11 // pred_check_branch
          %577 = sbr.rel (%p575) target = $region20
        $region19: #{defect_prediction_forward.1} parent=11 // pred_region
          _
        $region20: #{defect_prediction_forward.1} parent=11 // pred_fallthru
          _
        // Predicated region
        $region21: #{defect_prediction_forward.1} parent=11 // pred_check
          %p578 = pneg %p468
        $region22: #{defect_prediction_forward.1} parent=11 // pred_check_branch
          %580 = sbr.rel (%p578) target = $region24
        $region23: #{defect_prediction_forward.1} parent=11 // pred_region
          _
        $region24: #{defect_prediction_forward.1} parent=11 // pred_fallthru
          _
        // Predicated region
        $region25: #{defect_prediction_forward.1} parent=11 // pred_check
          %p581 = pneg %p489
        $region26: #{defect_prediction_forward.1} parent=11 // pred_check_branch
          %583 = sbr.rel (%p581) target = $region28
        $region27: #{defect_prediction_forward.1} parent=11 // pred_region
          _
        $region28: #{defect_prediction_forward.1} parent=11 // pred_fallthru
          _
        // Predicated region
        $region29: #{defect_prediction_forward.1} parent=11 // pred_check
          %p584 = pneg %p510
        $region30: #{defect_prediction_forward.1} parent=11 // pred_check_branch
          %586 = sbr.rel (%p584) target = $region32
        $region31: #{defect_prediction_forward.1} parent=11 // pred_region
          _
        $region32: #{defect_prediction_forward.1} parent=11 // pred_fallthru
          _
        // Predicated region
        $region33: #{defect_prediction_forward.1} parent=11 // pred_check
          %p587 = pneg %p531
        $region34: #{defect_prediction_forward.1} parent=11 // pred_check_branch
          %589 = sbr.rel (%p587) target = $region36
        $region35: #{defect_prediction_forward.1} parent=11 // pred_region
          _
        $region36: #{defect_prediction_forward.1} parent=11 // pred_fallthru
          _
      $region12: #{defect_prediction_forward.1} parent=5 // pred_fallthru
        _
      %p590 = scmp.lt.s32.totalorder %s29, 4
      // Predicated region
      $region37: #{defect_prediction_forward.1} parent=5 // pred_check
        %p591 = pneg %p590
      $region38: #{defect_prediction_forward.1} parent=5 // pred_check_branch
        %593 = sbr.rel (%p591) target = $region40
      $region39: #{defect_prediction_forward.1} parent=5 // pred_region
        // Predicated region
        $region41: #{defect_prediction_forward.1} parent=39 // pred_check
          %p594 = pneg %p61
        $region42: #{defect_prediction_forward.1} parent=39 // pred_check_branch
          %596 = sbr.rel (%p594) target = $region44
        $region43: #{defect_prediction_forward.1} parent=39 // pred_region
          %p597 = scmp.lt.s32.totalorder %s36, 1
          %s598 = scalar_select %p597, %s36, 1
          %s599 = smul.addr %s598, 8
          %s600 = scalar_lea.vmem %s0, %s599
        $region44: #{defect_prediction_forward.1} parent=39 // pred_fallthru
          _
        // Predicated region
        $region45: #{defect_prediction_forward.1} parent=39 // pred_check
          %p601 = pneg %p87
        $region46: #{defect_prediction_forward.1} parent=39 // pred_check_branch
          %603 = sbr.rel (%p601) target = $region48
        $region47: #{defect_prediction_forward.1} parent=39 // pred_region
          %p604 = scmp.lt.s32.totalorder %s36, 1
          %s605 = scalar_select %p604, %s36, 1
          %s606 = scalar_lea.vmem %s1, %s605
        $region48: #{defect_prediction_forward.1} parent=39 // pred_fallthru
          _
        // Predicated region
        $region49: #{defect_prediction_forward.1} parent=39 // pred_check
          %p607 = pneg %p155
        $region50: #{defect_prediction_forward.1} parent=39 // pred_check_branch
          %609 = sbr.rel (%p607) target = $region52
        $region51: #{defect_prediction_forward.1} parent=39 // pred_region
          %p610 = scmp.lt.s32.totalorder %s37, 1
          %s611 = scalar_select %p610, %s37, 1
          %s612 = smul.addr %s611, 4
          %s613 = smul.addr %s612, 8
          %s614 = scalar_lea.vmem %s4, %s613
        $region52: #{defect_prediction_forward.1} parent=39 // pred_fallthru
          _
        // Predicated region
        $region53: #{defect_prediction_forward.1} parent=39 // pred_check
          %p615 = pneg %p181
        $region54: #{defect_prediction_forward.1} parent=39 // pred_check_branch
          %617 = sbr.rel (%p615) target = $region56
        $region55: #{defect_prediction_forward.1} parent=39 // pred_region
          %p618 = scmp.lt.s32.totalorder %s37, 1
          %s619 = scalar_select %p618, %s37, 1
          %s620 = scalar_lea.vmem %s5, %s619
        $region56: #{defect_prediction_forward.1} parent=39 // pred_fallthru
          _
        // Predicated region
        $region57: #{defect_prediction_forward.1} parent=39 // pred_check
          %p621 = pneg %p207
        $region58: #{defect_prediction_forward.1} parent=39 // pred_check_branch
          %623 = sbr.rel (%p621) target = $region60
        $region59: #{defect_prediction_forward.1} parent=39 // pred_region
          %p624 = scmp.lt.s32.totalorder %s37, 1
          %s625 = scalar_select %p624, %s37, 1
          %s626 = smul.addr %s625, 4
          %s627 = smul.addr %s626, 8
          %s628 = scalar_lea.vmem %s6, %s627
        $region60: #{defect_prediction_forward.1} parent=39 // pred_fallthru
          _
        // Predicated region
        $region61: #{defect_prediction_forward.1} parent=39 // pred_check
          %p629 = pneg %p233
        $region62: #{defect_prediction_forward.1} parent=39 // pred_check_branch
          %631 = sbr.rel (%p629) target = $region64
        $region63: #{defect_prediction_forward.1} parent=39 // pred_region
          %p632 = scmp.lt.s32.totalorder %s37, 1
          %s633 = scalar_select %p632, %s37, 1
          %s634 = scalar_lea.vmem %s7, %s633
        $region64: #{defect_prediction_forward.1} parent=39 // pred_fallthru
          _
        // Predicated region
        $region65: #{defect_prediction_forward.1} parent=39 // pred_check
          %p635 = pneg %p259
        $region66: #{defect_prediction_forward.1} parent=39 // pred_check_branch
          %637 = sbr.rel (%p635) target = $region68
        $region67: #{defect_prediction_forward.1} parent=39 // pred_region
          %p638 = scmp.lt.s32.totalorder %s37, 1
          %s639 = scalar_select %p638, %s37, 1
          %s640 = scalar_lea.vmem %s8, %s639
        $region68: #{defect_prediction_forward.1} parent=39 // pred_fallthru
          _
        // Predicated region
        $region69: #{defect_prediction_forward.1} parent=39 // pred_check
          %p641 = pneg %p285
        $region70: #{defect_prediction_forward.1} parent=39 // pred_check_branch
          %643 = sbr.rel (%p641) target = $region72
        $region71: #{defect_prediction_forward.1} parent=39 // pred_region
          %p644 = scmp.lt.s32.totalorder %s37, 1
          %s645 = scalar_select %p644, %s37, 1
          %s646 = scalar_lea.vmem %s9, %s645
        $region72: #{defect_prediction_forward.1} parent=39 // pred_fallthru
          _
        // Predicated region
        $region73: #{defect_prediction_forward.1} parent=39 // pred_check
          %p647 = pneg %p311
        $region74: #{defect_prediction_forward.1} parent=39 // pred_check_branch
          %649 = sbr.rel (%p647) target = $region76
        $region75: #{defect_prediction_forward.1} parent=39 // pred_region
          %p650 = scmp.lt.s32.totalorder %s37, 1
          %s651 = scalar_select %p650, %s37, 1
          %s652 = smul.addr %s651, 4
          %s653 = smul.addr %s652, 8
          %s654 = scalar_lea.vmem %s10, %s653
        $region76: #{defect_prediction_forward.1} parent=39 // pred_fallthru
          _
        // Predicated region
        $region77: #{defect_prediction_forward.1} parent=39 // pred_check
          %p655 = pneg %p337
        $region78: #{defect_prediction_forward.1} parent=39 // pred_check_branch
          %657 = sbr.rel (%p655) target = $region80
        $region79: #{defect_prediction_forward.1} parent=39 // pred_region
          %p658 = scmp.lt.s32.totalorder %s37, 1
          %s659 = scalar_select %p658, %s37, 1
          %s660 = scalar_lea.vmem %s11, %s659
        $region80: #{defect_prediction_forward.1} parent=39 // pred_fallthru
          _
        // Predicated region
        $region81: #{defect_prediction_forward.1} parent=39 // pred_check
          %p661 = pneg %p363
        $region82: #{defect_prediction_forward.1} parent=39 // pred_check_branch
          %663 = sbr.rel (%p661) target = $region84
        $region83: #{defect_prediction_forward.1} parent=39 // pred_region
          %p664 = scmp.lt.s32.totalorder %s37, 1
          %s665 = scalar_select %p664, %s37, 1
          %s666 = smul.addr %s665, 8
          %s667 = smul.addr %s666, 8
          %s668 = scalar_lea.vmem %s12, %s667
        $region84: #{defect_prediction_forward.1} parent=39 // pred_fallthru
          _
        // Predicated region
        $region85: #{defect_prediction_forward.1} parent=39 // pred_check
          %p669 = pneg %p389
        $region86: #{defect_prediction_forward.1} parent=39 // pred_check_branch
          %671 = sbr.rel (%p669) target = $region88
        $region87: #{defect_prediction_forward.1} parent=39 // pred_region
          %p672 = scmp.lt.s32.totalorder %s37, 1
          %s673 = scalar_select %p672, %s37, 1
          %s674 = scalar_lea.vmem %s13, %s673
        $region88: #{defect_prediction_forward.1} parent=39 // pred_fallthru
          _
        // Predicated region
        $region89: #{defect_prediction_forward.1} parent=39 // pred_check
          %p675 = pneg %p415
        $region90: #{defect_prediction_forward.1} parent=39 // pred_check_branch
          %677 = sbr.rel (%p675) target = $region92
        $region91: #{defect_prediction_forward.1} parent=39 // pred_region
          %p678 = scmp.lt.s32.totalorder %s37, 1
          %s679 = scalar_select %p678, %s37, 1
          %s680 = scalar_lea.vmem %s14, %s679
        $region92: #{defect_prediction_forward.1} parent=39 // pred_fallthru
          _
        // Predicated region
        $region93: #{defect_prediction_forward.1} parent=39 // pred_check
          %p681 = pneg %p441
        $region94: #{defect_prediction_forward.1} parent=39 // pred_check_branch
          %683 = sbr.rel (%p681) target = $region96
        $region95: #{defect_prediction_forward.1} parent=39 // pred_region
          %p684 = scmp.lt.s32.totalorder %s37, 1
          %s685 = scalar_select %p684, %s37, 1
          %s686 = scalar_lea.vmem %s15, %s685
        $region96: #{defect_prediction_forward.1} parent=39 // pred_fallthru
          _
      $region40: #{defect_prediction_forward.1} parent=5 // pred_fallthru
        _
      %p687 = scmp.le.s32.totalorder 1, %s29
      %p688 = scmp.lt.s32.totalorder %s29, 5
      %p689 = pnand %p687, %p688
      %p690 = pneg %p689
      // Predicated region
      $region97: #{defect_prediction_forward.1} parent=5 // pred_check
        _
      $region98: #{defect_prediction_forward.1} parent=5 // pred_check_branch
        %692 = sbr.rel (%p689) target = $region100
      $region99: #{defect_prediction_forward.1} parent=5 // pred_region
        %s693 = ssub.s32 %s29, 1
        %p694 = scmp.lt.s32.totalorder %s38, 1
        %s695 = scalar_select %p694, %s38, 1
        %s696 = smul.addr %s695, 8
        %s697 = scalar_lea.vmem %s0, %s696
        %p698 = pneg %p67
        %p699 = pneg %p64
        %p700 = scmp.lt.s32.totalorder %s38, 1
        %s701 = scalar_select %p700, %s38, 1
        %s702 = scalar_lea.vmem %s1, %s701
        %p703 = pneg %p93
        %p704 = pneg %p90
        %p705 = pneg %p114
        %p706 = pneg %p111
        %p707 = pneg %p135
        %p708 = pneg %p132
        %p709 = scmp.lt.s32.totalorder %s39, 1
        %s710 = scalar_select %p709, %s39, 1
        %s711 = smul.addr %s710, 4
        %s712 = smul.addr %s711, 8
        %s713 = scalar_lea.vmem %s4, %s712
        %p714 = pneg %p161
        %p715 = pneg %p158
        %p716 = scmp.lt.s32.totalorder %s39, 1
        %s717 = scalar_select %p716, %s39, 1
        %s718 = scalar_lea.vmem %s5, %s717
        %p719 = pneg %p187
        %p720 = pneg %p184
        %p721 = scmp.lt.s32.totalorder %s39, 1
        %s722 = scalar_select %p721, %s39, 1
        %s723 = smul.addr %s722, 4
        %s724 = smul.addr %s723, 8
        %s725 = scalar_lea.vmem %s6, %s724
        %p726 = pneg %p213
        %p727 = pneg %p210
        %p728 = scmp.lt.s32.totalorder %s39, 1
        %s729 = scalar_select %p728, %s39, 1
        %s730 = scalar_lea.vmem %s7, %s729
        %p731 = pneg %p239
        %p732 = pneg %p236
        %p733 = scmp.lt.s32.totalorder %s39, 1
        %s734 = scalar_select %p733, %s39, 1
        %s735 = scalar_lea.vmem %s8, %s734
        %p736 = pneg %p265
        %p737 = pneg %p262
        %p738 = scmp.lt.s32.totalorder %s39, 1
        %s739 = scalar_select %p738, %s39, 1
        %s740 = scalar_lea.vmem %s9, %s739
        %p741 = pneg %p291
        %p742 = pneg %p288
        %p743 = scmp.lt.s32.totalorder %s39, 1
        %s744 = scalar_select %p743, %s39, 1
        %s745 = smul.addr %s744, 4
        %s746 = smul.addr %s745, 8
        %s747 = scalar_lea.vmem %s10, %s746
        %p748 = pneg %p317
        %p749 = pneg %p314
        %p750 = scmp.lt.s32.totalorder %s39, 1
        %s751 = scalar_select %p750, %s39, 1
        %s752 = scalar_lea.vmem %s11, %s751
        %p753 = pneg %p343
        %p754 = pneg %p340
        %p755 = scmp.lt.s32.totalorder %s39, 1
        %s756 = scalar_select %p755, %s39, 1
        %s757 = smul.addr %s756, 8
        %s758 = smul.addr %s757, 8
        %s759 = scalar_lea.vmem %s12, %s758
        %p760 = pneg %p369
        %p761 = pneg %p366
        %p762 = scmp.lt.s32.totalorder %s39, 1
        %s763 = scalar_select %p762, %s39, 1
        %s764 = scalar_lea.vmem %s13, %s763
        %p765 = pneg %p395
        %p766 = pneg %p392
        %p767 = scmp.lt.s32.totalorder %s39, 1
        %s768 = scalar_select %p767, %s39, 1
        %s769 = scalar_lea.vmem %s14, %s768
        %p770 = pneg %p421
        %p771 = pneg %p418
        %p772 = scmp.lt.s32.totalorder %s39, 1
        %s773 = scalar_select %p772, %s39, 1
        %s774 = scalar_lea.vmem %s15, %s773
        %p775 = pneg %p447
        %p776 = pneg %p444
        %p777 = pneg %p468
        %p778 = pneg %p465
        %p779 = pneg %p489
        %p780 = pneg %p486
        %p781 = pneg %p510
        %p782 = pneg %p507
        %p783 = pneg %p531
        %p784 = pneg %p528
        %p785 = pneg %p557
        %p786 = pneg %p554
        %s787 = sand.u32 %s544, 1
        %s788 = scalar_lea.sflag [#allocation4], %s787
        %s789 = sand.u32 %s544, 1
        %s790 = scalar_lea.vmem [#allocation3], %s789
        %p791 = scmp.lt.s32.totalorder %s38, 1
        %s792 = scalar_select %p791, %s38, 1
        %s793 = smul.addr %s792, 8
        %s794 = scalar_lea.vmem %s0, %s793
        %p795 = scmp.lt.s32.totalorder %s38, 1
        %s796 = scalar_select %p795, %s38, 1
        %s797 = scalar_lea.vmem %s1, %s796
        %p798 = scmp.lt.s32.totalorder %s39, 1
        %s799 = scalar_select %p798, %s39, 1
        %s800 = smul.addr %s799, 4
        %s801 = smul.addr %s800, 8
        %s802 = scalar_lea.vmem %s4, %s801
        %p803 = scmp.lt.s32.totalorder %s39, 1
        %s804 = scalar_select %p803, %s39, 1
        %s805 = scalar_lea.vmem %s5, %s804
        %p806 = scmp.lt.s32.totalorder %s39, 1
        %s807 = scalar_select %p806, %s39, 1
        %s808 = smul.addr %s807, 4
        %s809 = smul.addr %s808, 8
        %s810 = scalar_lea.vmem %s6, %s809
        %p811 = scmp.lt.s32.totalorder %s39, 1
        %s812 = scalar_select %p811, %s39, 1
        %s813 = scalar_lea.vmem %s7, %s812
        %p814 = scmp.lt.s32.totalorder %s39, 1
        %s815 = scalar_select %p814, %s39, 1
        %s816 = scalar_lea.vmem %s8, %s815
        %p817 = scmp.lt.s32.totalorder %s39, 1
        %s818 = scalar_select %p817, %s39, 1
        %s819 = scalar_lea.vmem %s9, %s818
        %p820 = scmp.lt.s32.totalorder %s39, 1
        %s821 = scalar_select %p820, %s39, 1
        %s822 = smul.addr %s821, 4
        %s823 = smul.addr %s822, 8
        %s824 = scalar_lea.vmem %s10, %s823
        %p825 = scmp.lt.s32.totalorder %s39, 1
        %s826 = scalar_select %p825, %s39, 1
        %s827 = scalar_lea.vmem %s11, %s826
        %p828 = scmp.lt.s32.totalorder %s39, 1
        %s829 = scalar_select %p828, %s39, 1
        %s830 = smul.addr %s829, 8
        %s831 = smul.addr %s830, 8
        %s832 = scalar_lea.vmem %s12, %s831
        %p833 = scmp.lt.s32.totalorder %s39, 1
        %s834 = scalar_select %p833, %s39, 1
        %s835 = scalar_lea.vmem %s13, %s834
        %p836 = scmp.lt.s32.totalorder %s39, 1
        %s837 = scalar_select %p836, %s39, 1
        %s838 = scalar_lea.vmem %s14, %s837
        %p839 = scmp.lt.s32.totalorder %s39, 1
        %s840 = scalar_select %p839, %s39, 1
        %s841 = scalar_lea.vmem %s15, %s840
        %p842 = scmp.eq.s32.totalorder %s39, 0
        // Predicated region
        $region101: #{defect_prediction_forward.1} parent=99 // pred_check
          %p843 = pneg %p842
        $region102: #{defect_prediction_forward.1} parent=99 // pred_check_branch
          %845 = sbr.rel (%p843) target = $region104
        $region103: #{defect_prediction_forward.1} parent=99 // pred_region
          %v846 = vld [vmem:[%s794] sm:$0xff]
          %v847 = vld [vmem:[%s2] sm:$0x1]
          %v848 = vld [vmem:[%s3] sm:$0x1]
          %vm849 = vcmask 261120
          %v850 = vsel %vm849, %v846, 0.0
          %851 = vadd.xlane.f32.xlu0 %v850
          %v852 = vpop.xlane.xlu0 %851
          %v853 = vrcp.pop 32.0
          %v854 = vmul.f32 %v852, %v853
          %v855 = vsub.f32 %v846, %v854
          %v856 = vmul.f32 %v855, %v855
          %v857 = vsel %vm849, %v856, 0.0
          %858 = vadd.xlane.f32.xlu0 %v857
          %v859 = vpop.xlane.xlu0 %858
          %v860 = vmul.f32 %v859, %v853
          %v861 = vadd.f32 %v860, 1e-05
          %v862 = vrsqrt.pop %v861
          %v863 = vmul.f32 %v855, %v862
          %v865 = vlaneseq
          %v866 = vshrl.u32 %v865, 7
          %v867 = vsub.s32 0, %v866
          %v868 = vrot.slane %v847, %v867
          %v870 = vmul.f32 %v863, %v868
          %v872 = vlaneseq
          %v873 = vshrl.u32 %v872, 7
          %v874 = vsub.s32 0, %v873
          %v875 = vrot.slane %v848, %v874
          %v877 = vadd.f32 %v870, %v875
          %878 = vst.msk [vmem:[#allocation2] sm:$0xff] %vm849, %v877
        $region104: #{defect_prediction_forward.1} parent=99 // pred_fallthru
          _
        %v879 = vld [vmem:[#allocation2] sm:$0xff]
        %v880 = vld [vmem:[%s797] sm:$0x1]
        %v881 = vld [vmem:[%s802] sm:$0xff]
        %v882 = vld [vmem:[%s802 + $0x8] sm:$0xff]
        %v883 = vld [vmem:[%s802 + $0x10] sm:$0xff]
        %v884 = vld [vmem:[%s802 + $0x18] sm:$0xff]
        %v885 = vld [vmem:[%s805] sm:$0x1]
        %v887 = vlaneseq
        %v888 = vshrl.u32 %v887, 7
        %v889 = vsub.s32 0, %v888
        %v890 = vrot.slane %v885, %v889
        %vm892 = vcmask 261120
        %v894 = vsel %vm892, %v879, 0
        %896 = vmatprep.subr.mxu0 0.0
        %897 = vmatpush1.msra.mxu0 %v881
        %898 = vmatprep.subr.mxu0 0.0
        %899 = vmatpush1.msra.mxu0 %v882
        %900 = vmatprep.subr.mxu0 0.0
        %901 = vmatpush1.msra.mxu0 %v883
        %902 = vmatprep.subr.mxu0 0.0
        %903 = vmatpush1.msra.mxu0 %v884
        %904 = vmatprep.subr.mxu0 0.0
        %905 = vmatpush1.msra.mxu0 0.0
        %906 = vmatprep.subr.mxu0 0.0
        %907 = vmatpush1.msra.mxu0 0.0
        %908 = vmatprep.subr.mxu0 0.0
        %909 = vmatpush1.msra.mxu0 0.0
        %910 = vmatprep.subr.mxu0 0.0
        %911 = vmatpush1.msra.mxu0 0.0
        %912 = vmatprep.subr.mxu0 0.0
        %913 = vmatpush1.msra.mxu0 0.0
        %914 = vmatprep.subr.mxu0 0.0
        %915 = vmatpush1.msra.mxu0 0.0
        %916 = vmatprep.subr.mxu0 0.0
        %917 = vmatpush1.msra.mxu0 0.0
        %918 = vmatprep.subr.mxu0 0.0
        %919 = vmatpush1.msra.mxu0 0.0
        %920 = vmatprep.subr.mxu0 0.0
        %921 = vmatpush1.msra.mxu0 0.0
        %922 = vmatprep.subr.mxu0 0.0
        %923 = vmatpush1.msra.mxu0 0.0
        %924 = vmatprep.subr.mxu0 0.0
        %925 = vmatpush1.msra.mxu0 0.0
        %926 = vmatprep.subr.mxu0 0.0
        %927 = vmatpush1.msra.mxu0 0.0
        %928 = vmatprep.subr.mxu0 0.0
        %929 = vmatpush1.msra.mxu0 0.0
        %930 = vmatprep.subr.mxu0 0.0
        %931 = vmatpush1.msra.mxu0 0.0
        %932 = vmatprep.subr.mxu0 0.0
        %933 = vmatpush1.msra.mxu0 0.0
        %934 = vmatprep.subr.mxu0 0.0
        %935 = vmatpush1.msra.mxu0 0.0
        %936 = vmatprep.subr.mxu0 0.0
        %937 = vmatpush1.msra.mxu0 0.0
        %938 = vmatprep.subr.mxu0 0.0
        %939 = vmatpush1.msra.mxu0 0.0
        %940 = vmatprep.subr.mxu0 0.0
        %941 = vmatpush1.msra.mxu0 0.0
        %942 = vmatprep.subr.mxu0 0.0
        %943 = vmatpush1.msra.mxu0 0.0
        %944 = vmatprep.subr.mxu0 0.0
        %945 = vmatpush1.msra.mxu0 0.0
        %946 = vmatprep.subr.mxu0 0.0
        %947 = vmatpush1.msra.mxu0 0.0
        %948 = vmatprep.subr.mxu0 0.0
        %949 = vmatpush1.msra.mxu0 0.0
        %950 = vmatprep.subr.mxu0 0.0
        %951 = vmatpush1.msra.mxu0 0.0
        %952 = vmatprep.subr.mxu0 0.0
        %953 = vmatpush1.msra.mxu0 0.0
        %954 = vmatprep.subr.mxu0 0.0
        %955 = vmatpush1.msra.mxu0 0.0
        %956 = vmatprep.subr.mxu0 0.0
        %957 = vmatpush1.msra.mxu0 0.0
        %958 = vmatprep.subr.mxu0 0.0
        %959 = vmatpush1.msra.mxu0 0.0
        %960 = vmatprep.mubr.f32.mxu0 0.0
        %961 = vmatmul.mubr.f32.gmra.mrb[0].mxu0 %v894
        %v962 = vpop.f32.mrb[0].mxu0
        %v963 = vadd.f32 %v890, %v962
        %v964 = vpop.f32.mrb[0].mxu0
        %965 = vdwg.mxu0
        %v966 = vld [vmem:[%s810] sm:$0xff]
        %v967 = vld [vmem:[%s810 + $0x8] sm:$0xff]
        %v968 = vld [vmem:[%s810 + $0x10] sm:$0xff]
        %v969 = vld [vmem:[%s810 + $0x18] sm:$0xff]
        %v970 = vld [vmem:[%s813] sm:$0x1]
        %v972 = vlaneseq
        %v973 = vshrl.u32 %v972, 7
        %v974 = vsub.s32 0, %v973
        %v975 = vrot.slane %v880, %v974
        %978 = vrot.lane.b32.xlu0 %v963, 96
        %v979 = vpop.permute.xlu0 %978
        %vm980 = vcmask 64512
        %v981 = vsel %vm980, %v963, 0
        %v983 = vsel %vm980, %v979, 0
        %985 = vmatprep.subr.mxu0 0.0
        %986 = vmatpush1.xpose.msra.mxu0 %v983
        %987 = vmatprep.subr.mxu0 0.0
        %988 = vmatpush1.xpose.msra.mxu0 0.0
        %989 = vmatprep.subr.mxu0 0.0
        %990 = vmatpush1.xpose.msra.mxu0 0.0
        %991 = vmatprep.subr.mxu0 0.0
        %992 = vmatpush1.xpose.msra.mxu0 0.0
        %993 = vmatprep.subr.mxu0 0.0
        %994 = vmatpush1.xpose.msra.mxu0 0.0
        %995 = vmatprep.subr.mxu0 0.0
        %996 = vmatpush1.xpose.msra.mxu0 0.0
        %997 = vmatprep.subr.mxu0 0.0
        %998 = vmatpush1.xpose.msra.mxu0 0.0
        %999 = vmatprep.subr.mxu0 0.0
        %1000 = vmatpush1.xpose.msra.mxu0 0.0
        %1001 = vmatprep.subr.mxu0 0.0
        %1002 = vmatpush1.xpose.msra.mxu0 0.0
        %1003 = vmatprep.subr.mxu0 0.0
        %1004 = vmatpush1.xpose.msra.mxu0 0.0
        %1005 = vmatprep.subr.mxu0 0.0
        %1006 = vmatpush1.xpose.msra.mxu0 0.0
        %1007 = vmatprep.subr.mxu0 0.0
        %1008 = vmatpush1.xpose.msra.mxu0 0.0
        %1009 = vmatprep.subr.mxu0 0.0
        %1010 = vmatpush1.xpose.msra.mxu0 0.0
        %1011 = vmatprep.subr.mxu0 0.0
        %1012 = vmatpush1.xpose.msra.mxu0 0.0
        %1013 = vmatprep.subr.mxu0 0.0
        %1014 = vmatpush1.xpose.msra.mxu0 0.0
        %1015 = vmatprep.subr.mxu0 0.0
        %1016 = vmatpush1.xpose.msra.mxu0 0.0
        %1017 = vmatprep.subr.mxu0 0.0
        %1018 = vmatpush1.xpose.msra.mxu0 0.0
        %1019 = vmatprep.subr.mxu0 0.0
        %1020 = vmatpush1.xpose.msra.mxu0 0.0
        %1021 = vmatprep.subr.mxu0 0.0
        %1022 = vmatpush1.xpose.msra.mxu0 0.0
        %1023 = vmatprep.subr.mxu0 0.0
        %1024 = vmatpush1.xpose.msra.mxu0 0.0
        %1025 = vmatprep.subr.mxu0 0.0
        %1026 = vmatpush1.xpose.msra.mxu0 0.0
        %1027 = vmatprep.subr.mxu0 0.0
        %1028 = vmatpush1.xpose.msra.mxu0 0.0
        %1029 = vmatprep.subr.mxu0 0.0
        %1030 = vmatpush1.xpose.msra.mxu0 0.0
        %1031 = vmatprep.subr.mxu0 0.0
        %1032 = vmatpush1.xpose.msra.mxu0 0.0
        %1033 = vmatprep.subr.mxu0 0.0
        %1034 = vmatpush1.xpose.msra.mxu0 0.0
        %1035 = vmatprep.subr.mxu0 0.0
        %1036 = vmatpush1.xpose.msra.mxu0 0.0
        %1037 = vmatprep.subr.mxu0 0.0
        %1038 = vmatpush1.xpose.msra.mxu0 0.0
        %1039 = vmatprep.subr.mxu0 0.0
        %1040 = vmatpush1.xpose.msra.mxu0 0.0
        %1041 = vmatprep.subr.mxu0 0.0
        %1042 = vmatpush1.xpose.msra.mxu0 0.0
        %1043 = vmatprep.subr.mxu0 0.0
        %1044 = vmatpush1.xpose.msra.mxu0 0.0
        %1045 = vmatprep.subr.mxu0 0.0
        %1046 = vmatpush1.xpose.msra.mxu0 0.0
        %1047 = vmatprep.subr.mxu0 0.0
        %1048 = vmatpush1.xpose.msra.mxu0 0.0
        %1049 = vmatprep.mubr.f32.mxu0 0.0
        %1050 = vmatmul.mubr.f32.gmra.mrb[0].mxu0 %v981
        %v1051 = vpop.f32.mrb[0].mxu0
        %v1052 = vadd.f32 %v975, %v1051
        %v1053 = vpop.f32.mrb[0].mxu0
        %1054 = vdwg.mxu0
        %v1055 = vsel %vm980, %v1052, -inf
        %1056 = vmax.xlane.f32.xlu0 %v1055
        %v1057 = vpop.xlane.xlu0 %1056
        %v1058 = vsub.f32 %v1052, %v1057
        %v1059 = vmul.f32 %v1058, 1.442695
        %v1060 = vpow.pop %v1059
        %v1061 = vsel %vm980, %v1060, 0.0
        %1062 = vadd.xlane.f32.xlu0 %v1061
        %v1063 = vpop.xlane.xlu0 %1062
        %v1064 = vrcp.pop %v1063
        %v1065 = vmul.f32 %v1060, %v1064
        %1066 = vrot.lane.b32.xlu0 %v963, 64
        %v1067 = vpop.permute.xlu0 %1066
        %v1070 = vsel %vm980, %v1065, 0
        %1072 = vmatprep.subr.mxu0 0.0
        %1073 = vmatpush1.msra.mxu0 %v1067
        %1074 = vmatprep.subr.mxu0 0.0
        %1075 = vmatpush1.msra.mxu0 0.0
        %1076 = vmatprep.subr.mxu0 0.0
        %1077 = vmatpush1.msra.mxu0 0.0
        %1078 = vmatprep.subr.mxu0 0.0
        %1079 = vmatpush1.msra.mxu0 0.0
        %1080 = vmatprep.subr.mxu0 0.0
        %1081 = vmatpush1.msra.mxu0 0.0
        %1082 = vmatprep.subr.mxu0 0.0
        %1083 = vmatpush1.msra.mxu0 0.0
        %1084 = vmatprep.subr.mxu0 0.0
        %1085 = vmatpush1.msra.mxu0 0.0
        %1086 = vmatprep.subr.mxu0 0.0
        %1087 = vmatpush1.msra.mxu0 0.0
        %1088 = vmatprep.subr.mxu0 0.0
        %1089 = vmatpush1.msra.mxu0 0.0
        %1090 = vmatprep.subr.mxu0 0.0
        %1091 = vmatpush1.msra.mxu0 0.0
        %1092 = vmatprep.subr.mxu0 0.0
        %1093 = vmatpush1.msra.mxu0 0.0
        %1094 = vmatprep.subr.mxu0 0.0
        %1095 = vmatpush1.msra.mxu0 0.0
        %1096 = vmatprep.subr.mxu0 0.0
        %1097 = vmatpush1.msra.mxu0 0.0
        %1098 = vmatprep.subr.mxu0 0.0
        %1099 = vmatpush1.msra.mxu0 0.0
        %1100 = vmatprep.subr.mxu0 0.0
        %1101 = vmatpush1.msra.mxu0 0.0
        %1102 = vmatprep.subr.mxu0 0.0
        %1103 = vmatpush1.msra.mxu0 0.0
        %1104 = vmatprep.subr.mxu0 0.0
        %1105 = vmatpush1.msra.mxu0 0.0
        %1106 = vmatprep.subr.mxu0 0.0
        %1107 = vmatpush1.msra.mxu0 0.0
        %1108 = vmatprep.subr.mxu0 0.0
        %1109 = vmatpush1.msra.mxu0 0.0
        %1110 = vmatprep.subr.mxu0 0.0
        %1111 = vmatpush1.msra.mxu0 0.0
        %1112 = vmatprep.subr.mxu0 0.0
        %1113 = vmatpush1.msra.mxu0 0.0
        %1114 = vmatprep.subr.mxu0 0.0
        %1115 = vmatpush1.msra.mxu0 0.0
        %1116 = vmatprep.subr.mxu0 0.0
        %1117 = vmatpush1.msra.mxu0 0.0
        %1118 = vmatprep.subr.mxu0 0.0
        %1119 = vmatpush1.msra.mxu0 0.0
        %1120 = vmatprep.subr.mxu0 0.0
        %1121 = vmatpush1.msra.mxu0 0.0
        %1122 = vmatprep.subr.mxu0 0.0
        %1123 = vmatpush1.msra.mxu0 0.0
        %1124 = vmatprep.subr.mxu0 0.0
        %1125 = vmatpush1.msra.mxu0 0.0
        %1126 = vmatprep.subr.mxu0 0.0
        %1127 = vmatpush1.msra.mxu0 0.0
        %1128 = vmatprep.subr.mxu0 0.0
        %1129 = vmatpush1.msra.mxu0 0.0
        %1130 = vmatprep.subr.mxu0 0.0
        %1131 = vmatpush1.msra.mxu0 0.0
        %1132 = vmatprep.subr.mxu0 0.0
        %1133 = vmatpush1.msra.mxu0 0.0
        %1134 = vmatprep.subr.mxu0 0.0
        %1135 = vmatpush1.msra.mxu0 0.0
        %1136 = vmatprep.mubr.f32.mxu0 0.0
        %1137 = vmatmul.mubr.f32.gmra.mrb[0].mxu0 %v1070
        %v1138 = vpop.f32.mrb[0].mxu0
        %v1139 = vadd.f32 0.0, %v1138
        %v1140 = vpop.f32.mrb[0].mxu0
        %1141 = vdwg.mxu0
        %v1143 = vsel %vm980, %v1139, 0
        %1145 = vmatprep.subr.mxu0 0.0
        %1146 = vmatpush1.msra.mxu0 %v966
        %1147 = vmatprep.subr.mxu0 0.0
        %1148 = vmatpush1.msra.mxu0 0.0
        %1149 = vmatprep.subr.mxu0 0.0
        %1150 = vmatpush1.msra.mxu0 0.0
        %1151 = vmatprep.subr.mxu0 0.0
        %1152 = vmatpush1.msra.mxu0 0.0
        %1153 = vmatprep.subr.mxu0 0.0
        %1154 = vmatpush1.msra.mxu0 0.0
        %1155 = vmatprep.subr.mxu0 0.0
        %1156 = vmatpush1.msra.mxu0 0.0
        %1157 = vmatprep.subr.mxu0 0.0
        %1158 = vmatpush1.msra.mxu0 0.0
        %1159 = vmatprep.subr.mxu0 0.0
        %1160 = vmatpush1.msra.mxu0 0.0
        %1161 = vmatprep.subr.mxu0 0.0
        %1162 = vmatpush1.msra.mxu0 0.0
        %1163 = vmatprep.subr.mxu0 0.0
        %1164 = vmatpush1.msra.mxu0 0.0
        %1165 = vmatprep.subr.mxu0 0.0
        %1166 = vmatpush1.msra.mxu0 0.0
        %1167 = vmatprep.subr.mxu0 0.0
        %1168 = vmatpush1.msra.mxu0 0.0
        %1169 = vmatprep.subr.mxu0 0.0
        %1170 = vmatpush1.msra.mxu0 0.0
        %1171 = vmatprep.subr.mxu0 0.0
        %1172 = vmatpush1.msra.mxu0 0.0
        %1173 = vmatprep.subr.mxu0 0.0
        %1174 = vmatpush1.msra.mxu0 0.0
        %1175 = vmatprep.subr.mxu0 0.0
        %1176 = vmatpush1.msra.mxu0 0.0
        %1177 = vmatprep.subr.mxu0 0.0
        %1178 = vmatpush1.msra.mxu0 0.0
        %1179 = vmatprep.subr.mxu0 0.0
        %1180 = vmatpush1.msra.mxu0 0.0
        %1181 = vmatprep.subr.mxu0 0.0
        %1182 = vmatpush1.msra.mxu0 0.0
        %1183 = vmatprep.subr.mxu0 0.0
        %1184 = vmatpush1.msra.mxu0 0.0
        %1185 = vmatprep.subr.mxu0 0.0
        %1186 = vmatpush1.msra.mxu0 0.0
        %1187 = vmatprep.subr.mxu0 0.0
        %1188 = vmatpush1.msra.mxu0 0.0
        %1189 = vmatprep.subr.mxu0 0.0
        %1190 = vmatpush1.msra.mxu0 0.0
        %1191 = vmatprep.subr.mxu0 0.0
        %1192 = vmatpush1.msra.mxu0 0.0
        %1193 = vmatprep.subr.mxu0 0.0
        %1194 = vmatpush1.msra.mxu0 0.0
        %1195 = vmatprep.subr.mxu0 0.0
        %1196 = vmatpush1.msra.mxu0 0.0
        %1197 = vmatprep.subr.mxu0 0.0
        %1198 = vmatpush1.msra.mxu0 0.0
        %1199 = vmatprep.subr.mxu0 0.0
        %1200 = vmatpush1.msra.mxu0 0.0
        %1201 = vmatprep.subr.mxu0 0.0
        %1202 = vmatpush1.msra.mxu0 0.0
        %1203 = vmatprep.subr.mxu0 0.0
        %1204 = vmatpush1.msra.mxu0 0.0
        %1205 = vmatprep.subr.mxu0 0.0
        %1206 = vmatpush1.msra.mxu0 0.0
        %1207 = vmatprep.subr.mxu0 0.0
        %1208 = vmatpush1.msra.mxu0 0.0
        %1209 = vmatprep.mubr.f32.mxu0 0.0
        %1210 = vmatmul.mubr.f32.gmra.mrb[0].mxu0 %v1143
        %v1211 = vpop.f32.mrb[0].mxu0
        %v1212 = vadd.f32 0.0, %v1211
        %v1213 = vpop.f32.mrb[0].mxu0
        %1214 = vdwg.mxu0
        %v1216 = vlaneseq
        %v1217 = vshrl.u32 %v1216, 7
        %v1218 = vsub.s32 0, %v1217
        %v1219 = vrot.slane %v970, %v1218
        %v1221 = vadd.f32 %v1219, %v1212
        %1222 = vrot.lane.b32.xlu0 %v963, 120
        %v1223 = vpop.permute.xlu0 %1222
        %1224 = vrot.lane.b32.xlu0 %v963, 88
        %v1225 = vpop.permute.xlu0 %1224
        %v1226 = vsel %vm980, %v1223, 0
        %v1228 = vsel %vm980, %v1225, 0
        %1230 = vmatprep.subr.mxu0 0.0
        %1231 = vmatpush1.xpose.msra.mxu0 %v1228
        %1232 = vmatprep.subr.mxu0 0.0
        %1233 = vmatpush1.xpose.msra.mxu0 0.0
        %1234 = vmatprep.subr.mxu0 0.0
        %1235 = vmatpush1.xpose.msra.mxu0 0.0
        %1236 = vmatprep.subr.mxu0 0.0
        %1237 = vmatpush1.xpose.msra.mxu0 0.0
        %1238 = vmatprep.subr.mxu0 0.0
        %1239 = vmatpush1.xpose.msra.mxu0 0.0
        %1240 = vmatprep.subr.mxu0 0.0
        %1241 = vmatpush1.xpose.msra.mxu0 0.0
        %1242 = vmatprep.subr.mxu0 0.0
        %1243 = vmatpush1.xpose.msra.mxu0 0.0
        %1244 = vmatprep.subr.mxu0 0.0
        %1245 = vmatpush1.xpose.msra.mxu0 0.0
        %1246 = vmatprep.subr.mxu0 0.0
        %1247 = vmatpush1.xpose.msra.mxu0 0.0
        %1248 = vmatprep.subr.mxu0 0.0
        %1249 = vmatpush1.xpose.msra.mxu0 0.0
        %1250 = vmatprep.subr.mxu0 0.0
        %1251 = vmatpush1.xpose.msra.mxu0 0.0
        %1252 = vmatprep.subr.mxu0 0.0
        %1253 = vmatpush1.xpose.msra.mxu0 0.0
        %1254 = vmatprep.subr.mxu0 0.0
        %1255 = vmatpush1.xpose.msra.mxu0 0.0
        %1256 = vmatprep.subr.mxu0 0.0
        %1257 = vmatpush1.xpose.msra.mxu0 0.0
        %1258 = vmatprep.subr.mxu0 0.0
        %1259 = vmatpush1.xpose.msra.mxu0 0.0
        %1260 = vmatprep.subr.mxu0 0.0
        %1261 = vmatpush1.xpose.msra.mxu0 0.0
        %1262 = vmatprep.subr.mxu0 0.0
        %1263 = vmatpush1.xpose.msra.mxu0 0.0
        %1264 = vmatprep.subr.mxu0 0.0
        %1265 = vmatpush1.xpose.msra.mxu0 0.0
        %1266 = vmatprep.subr.mxu0 0.0
        %1267 = vmatpush1.xpose.msra.mxu0 0.0
        %1268 = vmatprep.subr.mxu0 0.0
        %1269 = vmatpush1.xpose.msra.mxu0 0.0
        %1270 = vmatprep.subr.mxu0 0.0
        %1271 = vmatpush1.xpose.msra.mxu0 0.0
        %1272 = vmatprep.subr.mxu0 0.0
        %1273 = vmatpush1.xpose.msra.mxu0 0.0
        %1274 = vmatprep.subr.mxu0 0.0
        %1275 = vmatpush1.xpose.msra.mxu0 0.0
        %1276 = vmatprep.subr.mxu0 0.0
        %1277 = vmatpush1.xpose.msra.mxu0 0.0
        %1278 = vmatprep.subr.mxu0 0.0
        %1279 = vmatpush1.xpose.msra.mxu0 0.0
        %1280 = vmatprep.subr.mxu0 0.0
        %1281 = vmatpush1.xpose.msra.mxu0 0.0
        %1282 = vmatprep.subr.mxu0 0.0
        %1283 = vmatpush1.xpose.msra.mxu0 0.0
        %1284 = vmatprep.subr.mxu0 0.0
        %1285 = vmatpush1.xpose.msra.mxu0 0.0
        %1286 = vmatprep.subr.mxu0 0.0
        %1287 = vmatpush1.xpose.msra.mxu0 0.0
        %1288 = vmatprep.subr.mxu0 0.0
        %1289 = vmatpush1.xpose.msra.mxu0 0.0
        %1290 = vmatprep.subr.mxu0 0.0
        %1291 = vmatpush1.xpose.msra.mxu0 0.0
        %1292 = vmatprep.subr.mxu0 0.0
        %1293 = vmatpush1.xpose.msra.mxu0 0.0
        %1294 = vmatprep.mubr.f32.mxu0 0.0
        %1295 = vmatmul.mubr.f32.gmra.mrb[0].mxu0 %v1226
        %v1296 = vpop.f32.mrb[0].mxu0
        %v1297 = vadd.f32 %v975, %v1296
        %v1298 = vpop.f32.mrb[0].mxu0
        %1299 = vdwg.mxu0
        %v1300 = vsel %vm980, %v1297, -inf
        %1301 = vmax.xlane.f32.xlu0 %v1300
        %v1302 = vpop.xlane.xlu0 %1301
        %v1303 = vsub.f32 %v1297, %v1302
        %v1304 = vmul.f32 %v1303, 1.442695
        %v1305 = vpow.pop %v1304
        %v1306 = vsel %vm980, %v1305, 0.0
        %1307 = vadd.xlane.f32.xlu0 %v1306
        %v1308 = vpop.xlane.xlu0 %1307
        %v1309 = vrcp.pop %v1308
        %v1310 = vmul.f32 %v1305, %v1309
        %1311 = vrot.lane.b32.xlu0 %v963, 56
        %v1312 = vpop.permute.xlu0 %1311
        %v1315 = vsel %vm980, %v1310, 0
        %1317 = vmatprep.subr.mxu0 0.0
        %1318 = vmatpush1.msra.mxu0 %v1312
        %1319 = vmatprep.subr.mxu0 0.0
        %1320 = vmatpush1.msra.mxu0 0.0
        %1321 = vmatprep.subr.mxu0 0.0
        %1322 = vmatpush1.msra.mxu0 0.0
        %1323 = vmatprep.subr.mxu0 0.0
        %1324 = vmatpush1.msra.mxu0 0.0
        %1325 = vmatprep.subr.mxu0 0.0
        %1326 = vmatpush1.msra.mxu0 0.0
        %1327 = vmatprep.subr.mxu0 0.0
        %1328 = vmatpush1.msra.mxu0 0.0
        %1329 = vmatprep.subr.mxu0 0.0
        %1330 = vmatpush1.msra.mxu0 0.0
        %1331 = vmatprep.subr.mxu0 0.0
        %1332 = vmatpush1.msra.mxu0 0.0
        %1333 = vmatprep.subr.mxu0 0.0
        %1334 = vmatpush1.msra.mxu0 0.0
        %1335 = vmatprep.subr.mxu0 0.0
        %1336 = vmatpush1.msra.mxu0 0.0
        %1337 = vmatprep.subr.mxu0 0.0
        %1338 = vmatpush1.msra.mxu0 0.0
        %1339 = vmatprep.subr.mxu0 0.0
        %1340 = vmatpush1.msra.mxu0 0.0
        %1341 = vmatprep.subr.mxu0 0.0
        %1342 = vmatpush1.msra.mxu0 0.0
        %1343 = vmatprep.subr.mxu0 0.0
        %1344 = vmatpush1.msra.mxu0 0.0
        %1345 = vmatprep.subr.mxu0 0.0
        %1346 = vmatpush1.msra.mxu0 0.0
        %1347 = vmatprep.subr.mxu0 0.0
        %1348 = vmatpush1.msra.mxu0 0.0
        %1349 = vmatprep.subr.mxu0 0.0
        %1350 = vmatpush1.msra.mxu0 0.0
        %1351 = vmatprep.subr.mxu0 0.0
        %1352 = vmatpush1.msra.mxu0 0.0
        %1353 = vmatprep.subr.mxu0 0.0
        %1354 = vmatpush1.msra.mxu0 0.0
        %1355 = vmatprep.subr.mxu0 0.0
        %1356 = vmatpush1.msra.mxu0 0.0
        %1357 = vmatprep.subr.mxu0 0.0
        %1358 = vmatpush1.msra.mxu0 0.0
        %1359 = vmatprep.subr.mxu0 0.0
        %1360 = vmatpush1.msra.mxu0 0.0
        %1361 = vmatprep.subr.mxu0 0.0
        %1362 = vmatpush1.msra.mxu0 0.0
        %1363 = vmatprep.subr.mxu0 0.0
        %1364 = vmatpush1.msra.mxu0 0.0
        %1365 = vmatprep.subr.mxu0 0.0
        %1366 = vmatpush1.msra.mxu0 0.0
        %1367 = vmatprep.subr.mxu0 0.0
        %1368 = vmatpush1.msra.mxu0 0.0
        %1369 = vmatprep.subr.mxu0 0.0
        %1370 = vmatpush1.msra.mxu0 0.0
        %1371 = vmatprep.subr.mxu0 0.0
        %1372 = vmatpush1.msra.mxu0 0.0
        %1373 = vmatprep.subr.mxu0 0.0
        %1374 = vmatpush1.msra.mxu0 0.0
        %1375 = vmatprep.subr.mxu0 0.0
        %1376 = vmatpush1.msra.mxu0 0.0
        %1377 = vmatprep.subr.mxu0 0.0
        %1378 = vmatpush1.msra.mxu0 0.0
        %1379 = vmatprep.subr.mxu0 0.0
        %1380 = vmatpush1.msra.mxu0 0.0
        %1381 = vmatprep.mubr.f32.mxu0 0.0
        %1382 = vmatmul.mubr.f32.gmra.mrb[0].mxu0 %v1315
        %v1383 = vpop.f32.mrb[0].mxu0
        %v1384 = vadd.f32 0.0, %v1383
        %v1385 = vpop.f32.mrb[0].mxu0
        %1386 = vdwg.mxu0
        %v1388 = vsel %vm980, %v1384, 0
        %1390 = vmatprep.subr.mxu0 0.0
        %1391 = vmatpush1.msra.mxu0 %v967
        %1392 = vmatprep.subr.mxu0 0.0
        %1393 = vmatpush1.msra.mxu0 0.0
        %1394 = vmatprep.subr.mxu0 0.0
        %1395 = vmatpush1.msra.mxu0 0.0
        %1396 = vmatprep.subr.mxu0 0.0
        %1397 = vmatpush1.msra.mxu0 0.0
        %1398 = vmatprep.subr.mxu0 0.0
        %1399 = vmatpush1.msra.mxu0 0.0
        %1400 = vmatprep.subr.mxu0 0.0
        %1401 = vmatpush1.msra.mxu0 0.0
        %1402 = vmatprep.subr.mxu0 0.0
        %1403 = vmatpush1.msra.mxu0 0.0
        %1404 = vmatprep.subr.mxu0 0.0
        %1405 = vmatpush1.msra.mxu0 0.0
        %1406 = vmatprep.subr.mxu0 0.0
        %1407 = vmatpush1.msra.mxu0 0.0
        %1408 = vmatprep.subr.mxu0 0.0
        %1409 = vmatpush1.msra.mxu0 0.0
        %1410 = vmatprep.subr.mxu0 0.0
        %1411 = vmatpush1.msra.mxu0 0.0
        %1412 = vmatprep.subr.mxu0 0.0
        %1413 = vmatpush1.msra.mxu0 0.0
        %1414 = vmatprep.subr.mxu0 0.0
        %1415 = vmatpush1.msra.mxu0 0.0
        %1416 = vmatprep.subr.mxu0 0.0
        %1417 = vmatpush1.msra.mxu0 0.0
        %1418 = vmatprep.subr.mxu0 0.0
        %1419 = vmatpush1.msra.mxu0 0.0
        %1420 = vmatprep.subr.mxu0 0.0
        %1421 = vmatpush1.msra.mxu0 0.0
        %1422 = vmatprep.subr.mxu0 0.0
        %1423 = vmatpush1.msra.mxu0 0.0
        %1424 = vmatprep.subr.mxu0 0.0
        %1425 = vmatpush1.msra.mxu0 0.0
        %1426 = vmatprep.subr.mxu0 0.0
        %1427 = vmatpush1.msra.mxu0 0.0
        %1428 = vmatprep.subr.mxu0 0.0
        %1429 = vmatpush1.msra.mxu0 0.0
        %1430 = vmatprep.subr.mxu0 0.0
        %1431 = vmatpush1.msra.mxu0 0.0
        %1432 = vmatprep.subr.mxu0 0.0
        %1433 = vmatpush1.msra.mxu0 0.0
        %1434 = vmatprep.subr.mxu0 0.0
        %1435 = vmatpush1.msra.mxu0 0.0
        %1436 = vmatprep.subr.mxu0 0.0
        %1437 = vmatpush1.msra.mxu0 0.0
        %1438 = vmatprep.subr.mxu0 0.0
        %1439 = vmatpush1.msra.mxu0 0.0
        %1440 = vmatprep.subr.mxu0 0.0
        %1441 = vmatpush1.msra.mxu0 0.0
        %1442 = vmatprep.subr.mxu0 0.0
        %1443 = vmatpush1.msra.mxu0 0.0
        %1444 = vmatprep.subr.mxu0 0.0
        %1445 = vmatpush1.msra.mxu0 0.0
        %1446 = vmatprep.subr.mxu0 0.0
        %1447 = vmatpush1.msra.mxu0 0.0
        %1448 = vmatprep.subr.mxu0 0.0
        %1449 = vmatpush1.msra.mxu0 0.0
        %1450 = vmatprep.subr.mxu0 0.0
        %1451 = vmatpush1.msra.mxu0 0.0
        %1452 = vmatprep.subr.mxu0 0.0
        %1453 = vmatpush1.msra.mxu0 0.0
        %1454 = vmatprep.mubr.f32.mxu0 0.0
        %1455 = vmatmul.mubr.f32.gmra.mrb[0].mxu0 %v1388
        %v1456 = vpop.f32.mrb[0].mxu0
        %v1457 = vadd.f32 0.0, %v1456
        %v1458 = vpop.f32.mrb[0].mxu0
        %1459 = vdwg.mxu0
        %v1460 = vadd.f32 %v1221, %v1457
        %1461 = vrot.lane.b32.xlu0 %v963, 112
        %v1462 = vpop.permute.xlu0 %1461
        %1463 = vrot.lane.b32.xlu0 %v963, 80
        %v1464 = vpop.permute.xlu0 %1463
        %v1465 = vsel %vm980, %v1462, 0
        %v1467 = vsel %vm980, %v1464, 0
        %1469 = vmatprep.subr.mxu0 0.0
        %1470 = vmatpush1.xpose.msra.mxu0 %v1467
        %1471 = vmatprep.subr.mxu0 0.0
        %1472 = vmatpush1.xpose.msra.mxu0 0.0
        %1473 = vmatprep.subr.mxu0 0.0
        %1474 = vmatpush1.xpose.msra.mxu0 0.0
        %1475 = vmatprep.subr.mxu0 0.0
        %1476 = vmatpush1.xpose.msra.mxu0 0.0
        %1477 = vmatprep.subr.mxu0 0.0
        %1478 = vmatpush1.xpose.msra.mxu0 0.0
        %1479 = vmatprep.subr.mxu0 0.0
        %1480 = vmatpush1.xpose.msra.mxu0 0.0
        %1481 = vmatprep.subr.mxu0 0.0
        %1482 = vmatpush1.xpose.msra.mxu0 0.0
        %1483 = vmatprep.subr.mxu0 0.0
        %1484 = vmatpush1.xpose.msra.mxu0 0.0
        %1485 = vmatprep.subr.mxu0 0.0
        %1486 = vmatpush1.xpose.msra.mxu0 0.0
        %1487 = vmatprep.subr.mxu0 0.0
        %1488 = vmatpush1.xpose.msra.mxu0 0.0
        %1489 = vmatprep.subr.mxu0 0.0
        %1490 = vmatpush1.xpose.msra.mxu0 0.0
        %1491 = vmatprep.subr.mxu0 0.0
        %1492 = vmatpush1.xpose.msra.mxu0 0.0
        %1493 = vmatprep.subr.mxu0 0.0
        %1494 = vmatpush1.xpose.msra.mxu0 0.0
        %1495 = vmatprep.subr.mxu0 0.0
        %1496 = vmatpush1.xpose.msra.mxu0 0.0
        %1497 = vmatprep.subr.mxu0 0.0
        %1498 = vmatpush1.xpose.msra.mxu0 0.0
        %1499 = vmatprep.subr.mxu0 0.0
        %1500 = vmatpush1.xpose.msra.mxu0 0.0
        %1501 = vmatprep.subr.mxu0 0.0
        %1502 = vmatpush1.xpose.msra.mxu0 0.0
        %1503 = vmatprep.subr.mxu0 0.0
        %1504 = vmatpush1.xpose.msra.mxu0 0.0
        %1505 = vmatprep.subr.mxu0 0.0
        %1506 = vmatpush1.xpose.msra.mxu0 0.0
        %1507 = vmatprep.subr.mxu0 0.0
        %1508 = vmatpush1.xpose.msra.mxu0 0.0
        %1509 = vmatprep.subr.mxu0 0.0
        %1510 = vmatpush1.xpose.msra.mxu0 0.0
        %1511 = vmatprep.subr.mxu0 0.0
        %1512 = vmatpush1.xpose.msra.mxu0 0.0
        %1513 = vmatprep.subr.mxu0 0.0
        %1514 = vmatpush1.xpose.msra.mxu0 0.0
        %1515 = vmatprep.subr.mxu0 0.0
        %1516 = vmatpush1.xpose.msra.mxu0 0.0
        %1517 = vmatprep.subr.mxu0 0.0
        %1518 = vmatpush1.xpose.msra.mxu0 0.0
        %1519 = vmatprep.subr.mxu0 0.0
        %1520 = vmatpush1.xpose.msra.mxu0 0.0
        %1521 = vmatprep.subr.mxu0 0.0
        %1522 = vmatpush1.xpose.msra.mxu0 0.0
        %1523 = vmatprep.subr.mxu0 0.0
        %1524 = vmatpush1.xpose.msra.mxu0 0.0
        %1525 = vmatprep.subr.mxu0 0.0
        %1526 = vmatpush1.xpose.msra.mxu0 0.0
        %1527 = vmatprep.subr.mxu0 0.0
        %1528 = vmatpush1.xpose.msra.mxu0 0.0
        %1529 = vmatprep.subr.mxu0 0.0
        %1530 = vmatpush1.xpose.msra.mxu0 0.0
        %1531 = vmatprep.subr.mxu0 0.0
        %1532 = vmatpush1.xpose.msra.mxu0 0.0
        %1533 = vmatprep.mubr.f32.mxu0 0.0
        %1534 = vmatmul.mubr.f32.gmra.mrb[0].mxu0 %v1465
        %v1535 = vpop.f32.mrb[0].mxu0
        %v1536 = vadd.f32 %v975, %v1535
        %v1537 = vpop.f32.mrb[0].mxu0
        %1538 = vdwg.mxu0
        %v1539 = vsel %vm980, %v1536, -inf
        %1540 = vmax.xlane.f32.xlu0 %v1539
        %v1541 = vpop.xlane.xlu0 %1540
        %v1542 = vsub.f32 %v1536, %v1541
        %v1543 = vmul.f32 %v1542, 1.442695
        %v1544 = vpow.pop %v1543
        %v1545 = vsel %vm980, %v1544, 0.0
        %1546 = vadd.xlane.f32.xlu0 %v1545
        %v1547 = vpop.xlane.xlu0 %1546
        %v1548 = vrcp.pop %v1547
        %v1549 = vmul.f32 %v1544, %v1548
        %1550 = vrot.lane.b32.xlu0 %v963, 48
        %v1551 = vpop.permute.xlu0 %1550
        %v1554 = vsel %vm980, %v1549, 0
        %1556 = vmatprep.subr.mxu0 0.0
        %1557 = vmatpush1.msra.mxu0 %v1551
        %1558 = vmatprep.subr.mxu0 0.0
        %1559 = vmatpush1.msra.mxu0 0.0
        %1560 = vmatprep.subr.mxu0 0.0
        %1561 = vmatpush1.msra.mxu0 0.0
        %1562 = vmatprep.subr.mxu0 0.0
        %1563 = vmatpush1.msra.mxu0 0.0
        %1564 = vmatprep.subr.mxu0 0.0
        %1565 = vmatpush1.msra.mxu0 0.0
        %1566 = vmatprep.subr.mxu0 0.0
        %1567 = vmatpush1.msra.mxu0 0.0
        %1568 = vmatprep.subr.mxu0 0.0
        %1569 = vmatpush1.msra.mxu0 0.0
        %1570 = vmatprep.subr.mxu0 0.0
        %1571 = vmatpush1.msra.mxu0 0.0
        %1572 = vmatprep.subr.mxu0 0.0
        %1573 = vmatpush1.msra.mxu0 0.0
        %1574 = vmatprep.subr.mxu0 0.0
        %1575 = vmatpush1.msra.mxu0 0.0
        %1576 = vmatprep.subr.mxu0 0.0
        %1577 = vmatpush1.msra.mxu0 0.0
        %1578 = vmatprep.subr.mxu0 0.0
        %1579 = vmatpush1.msra.mxu0 0.0
        %1580 = vmatprep.subr.mxu0 0.0
        %1581 = vmatpush1.msra.mxu0 0.0
        %1582 = vmatprep.subr.mxu0 0.0
        %1583 = vmatpush1.msra.mxu0 0.0
        %1584 = vmatprep.subr.mxu0 0.0
        %1585 = vmatpush1.msra.mxu0 0.0
        %1586 = vmatprep.subr.mxu0 0.0
        %1587 = vmatpush1.msra.mxu0 0.0
        %1588 = vmatprep.subr.mxu0 0.0
        %1589 = vmatpush1.msra.mxu0 0.0
        %1590 = vmatprep.subr.mxu0 0.0
        %1591 = vmatpush1.msra.mxu0 0.0
        %1592 = vmatprep.subr.mxu0 0.0
        %1593 = vmatpush1.msra.mxu0 0.0
        %1594 = vmatprep.subr.mxu0 0.0
        %1595 = vmatpush1.msra.mxu0 0.0
        %1596 = vmatprep.subr.mxu0 0.0
        %1597 = vmatpush1.msra.mxu0 0.0
        %1598 = vmatprep.subr.mxu0 0.0
        %1599 = vmatpush1.msra.mxu0 0.0
        %1600 = vmatprep.subr.mxu0 0.0
        %1601 = vmatpush1.msra.mxu0 0.0
        %1602 = vmatprep.subr.mxu0 0.0
        %1603 = vmatpush1.msra.mxu0 0.0
        %1604 = vmatprep.subr.mxu0 0.0
        %1605 = vmatpush1.msra.mxu0 0.0
        %1606 = vmatprep.subr.mxu0 0.0
        %1607 = vmatpush1.msra.mxu0 0.0
        %1608 = vmatprep.subr.mxu0 0.0
        %1609 = vmatpush1.msra.mxu0 0.0
        %1610 = vmatprep.subr.mxu0 0.0
        %1611 = vmatpush1.msra.mxu0 0.0
        %1612 = vmatprep.subr.mxu0 0.0
        %1613 = vmatpush1.msra.mxu0 0.0
        %1614 = vmatprep.subr.mxu0 0.0
        %1615 = vmatpush1.msra.mxu0 0.0
        %1616 = vmatprep.subr.mxu0 0.0
        %1617 = vmatpush1.msra.mxu0 0.0
        %1618 = vmatprep.subr.mxu0 0.0
        %1619 = vmatpush1.msra.mxu0 0.0
        %1620 = vmatprep.mubr.f32.mxu0 0.0
        %1621 = vmatmul.mubr.f32.gmra.mrb[0].mxu0 %v1554
        %v1622 = vpop.f32.mrb[0].mxu0
        %v1623 = vadd.f32 0.0, %v1622
        %v1624 = vpop.f32.mrb[0].mxu0
        %1625 = vdwg.mxu0
        %v1627 = vsel %vm980, %v1623, 0
        %1629 = vmatprep.subr.mxu0 0.0
        %1630 = vmatpush1.msra.mxu0 %v968
        %1631 = vmatprep.subr.mxu0 0.0
        %1632 = vmatpush1.msra.mxu0 0.0
        %1633 = vmatprep.subr.mxu0 0.0
        %1634 = vmatpush1.msra.mxu0 0.0
        %1635 = vmatprep.subr.mxu0 0.0
        %1636 = vmatpush1.msra.mxu0 0.0
        %1637 = vmatprep.subr.mxu0 0.0
        %1638 = vmatpush1.msra.mxu0 0.0
        %1639 = vmatprep.subr.mxu0 0.0
        %1640 = vmatpush1.msra.mxu0 0.0
        %1641 = vmatprep.subr.mxu0 0.0
        %1642 = vmatpush1.msra.mxu0 0.0
        %1643 = vmatprep.subr.mxu0 0.0
        %1644 = vmatpush1.msra.mxu0 0.0
        %1645 = vmatprep.subr.mxu0 0.0
        %1646 = vmatpush1.msra.mxu0 0.0
        %1647 = vmatprep.subr.mxu0 0.0
        %1648 = vmatpush1.msra.mxu0 0.0
        %1649 = vmatprep.subr.mxu0 0.0
        %1650 = vmatpush1.msra.mxu0 0.0
        %1651 = vmatprep.subr.mxu0 0.0
        %1652 = vmatpush1.msra.mxu0 0.0
        %1653 = vmatprep.subr.mxu0 0.0
        %1654 = vmatpush1.msra.mxu0 0.0
        %1655 = vmatprep.subr.mxu0 0.0
        %1656 = vmatpush1.msra.mxu0 0.0
        %1657 = vmatprep.subr.mxu0 0.0
        %1658 = vmatpush1.msra.mxu0 0.0
        %1659 = vmatprep.subr.mxu0 0.0
        %1660 = vmatpush1.msra.mxu0 0.0
        %1661 = vmatprep.subr.mxu0 0.0
        %1662 = vmatpush1.msra.mxu0 0.0
        %1663 = vmatprep.subr.mxu0 0.0
        %1664 = vmatpush1.msra.mxu0 0.0
        %1665 = vmatprep.subr.mxu0 0.0
        %1666 = vmatpush1.msra.mxu0 0.0
        %1667 = vmatprep.subr.mxu0 0.0
        %1668 = vmatpush1.msra.mxu0 0.0
        %1669 = vmatprep.subr.mxu0 0.0
        %1670 = vmatpush1.msra.mxu0 0.0
        %1671 = vmatprep.subr.mxu0 0.0
        %1672 = vmatpush1.msra.mxu0 0.0
        %1673 = vmatprep.subr.mxu0 0.0
        %1674 = vmatpush1.msra.mxu0 0.0
        %1675 = vmatprep.subr.mxu0 0.0
        %1676 = vmatpush1.msra.mxu0 0.0
        %1677 = vmatprep.subr.mxu0 0.0
        %1678 = vmatpush1.msra.mxu0 0.0
        %1679 = vmatprep.subr.mxu0 0.0
        %1680 = vmatpush1.msra.mxu0 0.0
        %1681 = vmatprep.subr.mxu0 0.0
        %1682 = vmatpush1.msra.mxu0 0.0
        %1683 = vmatprep.subr.mxu0 0.0
        %1684 = vmatpush1.msra.mxu0 0.0
        %1685 = vmatprep.subr.mxu0 0.0
        %1686 = vmatpush1.msra.mxu0 0.0
        %1687 = vmatprep.subr.mxu0 0.0
        %1688 = vmatpush1.msra.mxu0 0.0
        %1689 = vmatprep.subr.mxu0 0.0
        %1690 = vmatpush1.msra.mxu0 0.0
        %1691 = vmatprep.subr.mxu0 0.0
        %1692 = vmatpush1.msra.mxu0 0.0
        %1693 = vmatprep.mubr.f32.mxu0 0.0
        %1694 = vmatmul.mubr.f32.gmra.mrb[0].mxu0 %v1627
        %v1695 = vpop.f32.mrb[0].mxu0
        %v1696 = vadd.f32 0.0, %v1695
        %v1697 = vpop.f32.mrb[0].mxu0
        %1698 = vdwg.mxu0
        %v1699 = vadd.f32 %v1460, %v1696
        %1700 = vrot.lane.b32.xlu0 %v963, 104
        %v1701 = vpop.permute.xlu0 %1700
        %1702 = vrot.lane.b32.xlu0 %v963, 72
        %v1703 = vpop.permute.xlu0 %1702
        %v1704 = vsel %vm980, %v1701, 0
        %v1706 = vsel %vm980, %v1703, 0
        %1708 = vmatprep.subr.mxu0 0.0
        %1709 = vmatpush1.xpose.msra.mxu0 %v1706
        %1710 = vmatprep.subr.mxu0 0.0
        %1711 = vmatpush1.xpose.msra.mxu0 0.0
        %1712 = vmatprep.subr.mxu0 0.0
        %1713 = vmatpush1.xpose.msra.mxu0 0.0
        %1714 = vmatprep.subr.mxu0 0.0
        %1715 = vmatpush1.xpose.msra.mxu0 0.0
        %1716 = vmatprep.subr.mxu0 0.0
        %1717 = vmatpush1.xpose.msra.mxu0 0.0
        %1718 = vmatprep.subr.mxu0 0.0
        %1719 = vmatpush1.xpose.msra.mxu0 0.0
        %1720 = vmatprep.subr.mxu0 0.0
        %1721 = vmatpush1.xpose.msra.mxu0 0.0
        %1722 = vmatprep.subr.mxu0 0.0
        %1723 = vmatpush1.xpose.msra.mxu0 0.0
        %1724 = vmatprep.subr.mxu0 0.0
        %1725 = vmatpush1.xpose.msra.mxu0 0.0
        %1726 = vmatprep.subr.mxu0 0.0
        %1727 = vmatpush1.xpose.msra.mxu0 0.0
        %1728 = vmatprep.subr.mxu0 0.0
        %1729 = vmatpush1.xpose.msra.mxu0 0.0
        %1730 = vmatprep.subr.mxu0 0.0
        %1731 = vmatpush1.xpose.msra.mxu0 0.0
        %1732 = vmatprep.subr.mxu0 0.0
        %1733 = vmatpush1.xpose.msra.mxu0 0.0
        %1734 = vmatprep.subr.mxu0 0.0
        %1735 = vmatpush1.xpose.msra.mxu0 0.0
        %1736 = vmatprep.subr.mxu0 0.0
        %1737 = vmatpush1.xpose.msra.mxu0 0.0
        %1738 = vmatprep.subr.mxu0 0.0
        %1739 = vmatpush1.xpose.msra.mxu0 0.0
        %1740 = vmatprep.subr.mxu0 0.0
        %1741 = vmatpush1.xpose.msra.mxu0 0.0
        %1742 = vmatprep.subr.mxu0 0.0
        %1743 = vmatpush1.xpose.msra.mxu0 0.0
        %1744 = vmatprep.subr.mxu0 0.0
        %1745 = vmatpush1.xpose.msra.mxu0 0.0
        %1746 = vmatprep.subr.mxu0 0.0
        %1747 = vmatpush1.xpose.msra.mxu0 0.0
        %1748 = vmatprep.subr.mxu0 0.0
        %1749 = vmatpush1.xpose.msra.mxu0 0.0
        %1750 = vmatprep.subr.mxu0 0.0
        %1751 = vmatpush1.xpose.msra.mxu0 0.0
        %1752 = vmatprep.subr.mxu0 0.0
        %1753 = vmatpush1.xpose.msra.mxu0 0.0
        %1754 = vmatprep.subr.mxu0 0.0
        %1755 = vmatpush1.xpose.msra.mxu0 0.0
        %1756 = vmatprep.subr.mxu0 0.0
        %1757 = vmatpush1.xpose.msra.mxu0 0.0
        %1758 = vmatprep.subr.mxu0 0.0
        %1759 = vmatpush1.xpose.msra.mxu0 0.0
        %1760 = vmatprep.subr.mxu0 0.0
        %1761 = vmatpush1.xpose.msra.mxu0 0.0
        %1762 = vmatprep.subr.mxu0 0.0
        %1763 = vmatpush1.xpose.msra.mxu0 0.0
        %1764 = vmatprep.subr.mxu0 0.0
        %1765 = vmatpush1.xpose.msra.mxu0 0.0
        %1766 = vmatprep.subr.mxu0 0.0
        %1767 = vmatpush1.xpose.msra.mxu0 0.0
        %1768 = vmatprep.subr.mxu0 0.0
        %1769 = vmatpush1.xpose.msra.mxu0 0.0
        %1770 = vmatprep.subr.mxu0 0.0
        %1771 = vmatpush1.xpose.msra.mxu0 0.0
        %1772 = vmatprep.mubr.f32.mxu0 0.0
        %1773 = vmatmul.mubr.f32.gmra.mrb[0].mxu0 %v1704
        %v1774 = vpop.f32.mrb[0].mxu0
        %v1775 = vadd.f32 %v975, %v1774
        %v1776 = vpop.f32.mrb[0].mxu0
        %1777 = vdwg.mxu0
        %v1778 = vsel %vm980, %v1775, -inf
        %1779 = vmax.xlane.f32.xlu0 %v1778
        %v1780 = vpop.xlane.xlu0 %1779
        %v1781 = vsub.f32 %v1775, %v1780
        %v1782 = vmul.f32 %v1781, 1.442695
        %v1783 = vpow.pop %v1782
        %v1784 = vsel %vm980, %v1783, 0.0
        %1785 = vadd.xlane.f32.xlu0 %v1784
        %v1786 = vpop.xlane.xlu0 %1785
        %v1787 = vrcp.pop %v1786
        %v1788 = vmul.f32 %v1783, %v1787
        %1789 = vrot.lane.b32.xlu0 %v963, 40
        %v1790 = vpop.permute.xlu0 %1789
        %v1793 = vsel %vm980, %v1788, 0
        %1795 = vmatprep.subr.mxu0 0.0
        %1796 = vmatpush1.msra.mxu0 %v1790
        %1797 = vmatprep.subr.mxu0 0.0
        %1798 = vmatpush1.msra.mxu0 0.0
        %1799 = vmatprep.subr.mxu0 0.0
        %1800 = vmatpush1.msra.mxu0 0.0
        %1801 = vmatprep.subr.mxu0 0.0
        %1802 = vmatpush1.msra.mxu0 0.0
        %1803 = vmatprep.subr.mxu0 0.0
        %1804 = vmatpush1.msra.mxu0 0.0
        %1805 = vmatprep.subr.mxu0 0.0
        %1806 = vmatpush1.msra.mxu0 0.0
        %1807 = vmatprep.subr.mxu0 0.0
        %1808 = vmatpush1.msra.mxu0 0.0
        %1809 = vmatprep.subr.mxu0 0.0
        %1810 = vmatpush1.msra.mxu0 0.0
        %1811 = vmatprep.subr.mxu0 0.0
        %1812 = vmatpush1.msra.mxu0 0.0
        %1813 = vmatprep.subr.mxu0 0.0
        %1814 = vmatpush1.msra.mxu0 0.0
        %1815 = vmatprep.subr.mxu0 0.0
        %1816 = vmatpush1.msra.mxu0 0.0
        %1817 = vmatprep.subr.mxu0 0.0
        %1818 = vmatpush1.msra.mxu0 0.0
        %1819 = vmatprep.subr.mxu0 0.0
        %1820 = vmatpush1.msra.mxu0 0.0
        %1821 = vmatprep.subr.mxu0 0.0
        %1822 = vmatpush1.msra.mxu0 0.0
        %1823 = vmatprep.subr.mxu0 0.0
        %1824 = vmatpush1.msra.mxu0 0.0
        %1825 = vmatprep.subr.mxu0 0.0
        %1826 = vmatpush1.msra.mxu0 0.0
        %1827 = vmatprep.subr.mxu0 0.0
        %1828 = vmatpush1.msra.mxu0 0.0
        %1829 = vmatprep.subr.mxu0 0.0
        %1830 = vmatpush1.msra.mxu0 0.0
        %1831 = vmatprep.subr.mxu0 0.0
        %1832 = vmatpush1.msra.mxu0 0.0
        %1833 = vmatprep.subr.mxu0 0.0
        %1834 = vmatpush1.msra.mxu0 0.0
        %1835 = vmatprep.subr.mxu0 0.0
        %1836 = vmatpush1.msra.mxu0 0.0
        %1837 = vmatprep.subr.mxu0 0.0
        %1838 = vmatpush1.msra.mxu0 0.0
        %1839 = vmatprep.subr.mxu0 0.0
        %1840 = vmatpush1.msra.mxu0 0.0
        %1841 = vmatprep.subr.mxu0 0.0
        %1842 = vmatpush1.msra.mxu0 0.0
        %1843 = vmatprep.subr.mxu0 0.0
        %1844 = vmatpush1.msra.mxu0 0.0
        %1845 = vmatprep.subr.mxu0 0.0
        %1846 = vmatpush1.msra.mxu0 0.0
        %1847 = vmatprep.subr.mxu0 0.0
        %1848 = vmatpush1.msra.mxu0 0.0
        %1849 = vmatprep.subr.mxu0 0.0
        %1850 = vmatpush1.msra.mxu0 0.0
        %1851 = vmatprep.subr.mxu0 0.0
        %1852 = vmatpush1.msra.mxu0 0.0
        %1853 = vmatprep.subr.mxu0 0.0
        %1854 = vmatpush1.msra.mxu0 0.0
        %1855 = vmatprep.subr.mxu0 0.0
        %1856 = vmatpush1.msra.mxu0 0.0
        %1857 = vmatprep.subr.mxu0 0.0
        %1858 = vmatpush1.msra.mxu0 0.0
        %1859 = vmatprep.mubr.f32.mxu0 0.0
        %1860 = vmatmul.mubr.f32.gmra.mrb[0].mxu0 %v1793
        %v1861 = vpop.f32.mrb[0].mxu0
        %v1862 = vadd.f32 0.0, %v1861
        %v1863 = vpop.f32.mrb[0].mxu0
        %1864 = vdwg.mxu0
        %v1866 = vsel %vm980, %v1862, 0
        %1868 = vmatprep.subr.mxu0 0.0
        %1869 = vmatpush1.msra.mxu0 %v969
        %1870 = vmatprep.subr.mxu0 0.0
        %1871 = vmatpush1.msra.mxu0 0.0
        %1872 = vmatprep.subr.mxu0 0.0
        %1873 = vmatpush1.msra.mxu0 0.0
        %1874 = vmatprep.subr.mxu0 0.0
        %1875 = vmatpush1.msra.mxu0 0.0
        %1876 = vmatprep.subr.mxu0 0.0
        %1877 = vmatpush1.msra.mxu0 0.0
        %1878 = vmatprep.subr.mxu0 0.0
        %1879 = vmatpush1.msra.mxu0 0.0
        %1880 = vmatprep.subr.mxu0 0.0
        %1881 = vmatpush1.msra.mxu0 0.0
        %1882 = vmatprep.subr.mxu0 0.0
        %1883 = vmatpush1.msra.mxu0 0.0
        %1884 = vmatprep.subr.mxu0 0.0
        %1885 = vmatpush1.msra.mxu0 0.0
        %1886 = vmatprep.subr.mxu0 0.0
        %1887 = vmatpush1.msra.mxu0 0.0
        %1888 = vmatprep.subr.mxu0 0.0
        %1889 = vmatpush1.msra.mxu0 0.0
        %1890 = vmatprep.subr.mxu0 0.0
        %1891 = vmatpush1.msra.mxu0 0.0
        %1892 = vmatprep.subr.mxu0 0.0
        %1893 = vmatpush1.msra.mxu0 0.0
        %1894 = vmatprep.subr.mxu0 0.0
        %1895 = vmatpush1.msra.mxu0 0.0
        %1896 = vmatprep.subr.mxu0 0.0
        %1897 = vmatpush1.msra.mxu0 0.0
        %1898 = vmatprep.subr.mxu0 0.0
        %1899 = vmatpush1.msra.mxu0 0.0
        %1900 = vmatprep.subr.mxu0 0.0
        %1901 = vmatpush1.msra.mxu0 0.0
        %1902 = vmatprep.subr.mxu0 0.0
        %1903 = vmatpush1.msra.mxu0 0.0
        %1904 = vmatprep.subr.mxu0 0.0
        %1905 = vmatpush1.msra.mxu0 0.0
        %1906 = vmatprep.subr.mxu0 0.0
        %1907 = vmatpush1.msra.mxu0 0.0
        %1908 = vmatprep.subr.mxu0 0.0
        %1909 = vmatpush1.msra.mxu0 0.0
        %1910 = vmatprep.subr.mxu0 0.0
        %1911 = vmatpush1.msra.mxu0 0.0
        %1912 = vmatprep.subr.mxu0 0.0
        %1913 = vmatpush1.msra.mxu0 0.0
        %1914 = vmatprep.subr.mxu0 0.0
        %1915 = vmatpush1.msra.mxu0 0.0
        %1916 = vmatprep.subr.mxu0 0.0
        %1917 = vmatpush1.msra.mxu0 0.0
        %1918 = vmatprep.subr.mxu0 0.0
        %1919 = vmatpush1.msra.mxu0 0.0
        %1920 = vmatprep.subr.mxu0 0.0
        %1921 = vmatpush1.msra.mxu0 0.0
        %1922 = vmatprep.subr.mxu0 0.0
        %1923 = vmatpush1.msra.mxu0 0.0
        %1924 = vmatprep.subr.mxu0 0.0
        %1925 = vmatpush1.msra.mxu0 0.0
        %1926 = vmatprep.subr.mxu0 0.0
        %1927 = vmatpush1.msra.mxu0 0.0
        %1928 = vmatprep.subr.mxu0 0.0
        %1929 = vmatpush1.msra.mxu0 0.0
        %1930 = vmatprep.subr.mxu0 0.0
        %1931 = vmatpush1.msra.mxu0 0.0
        %1932 = vmatprep.mubr.f32.mxu0 0.0
        %1933 = vmatmul.mubr.f32.gmra.mrb[0].mxu0 %v1866
        %v1934 = vpop.f32.mrb[0].mxu0
        %v1935 = vadd.f32 0.0, %v1934
        %v1936 = vpop.f32.mrb[0].mxu0
        %1937 = vdwg.mxu0
        %v1938 = vadd.f32 %v1699, %v1935
        %v1939 = vadd.f32 %v1938, %v879
        %v1940 = vld [vmem:[%s816] sm:$0x1]
        %v1941 = vld [vmem:[%s819] sm:$0x1]
        %v1942 = vsel %vm892, %v1939, 0.0
        %1943 = vadd.xlane.f32.xlu0 %v1942
        %v1944 = vpop.xlane.xlu0 %1943
        %v1945 = vrcp.pop 32.0
        %v1946 = vmul.f32 %v1944, %v1945
        %v1947 = vsub.f32 %v1939, %v1946
        %v1948 = vmul.f32 %v1947, %v1947
        %v1949 = vsel %vm892, %v1948, 0.0
        %1950 = vadd.xlane.f32.xlu0 %v1949
        %v1951 = vpop.xlane.xlu0 %1950
        %v1952 = vmul.f32 %v1951, %v1945
        %v1953 = vadd.f32 %v1952, 1e-05
        %v1954 = vrsqrt.pop %v1953
        %v1955 = vmul.f32 %v1947, %v1954
        %v1957 = vlaneseq
        %v1958 = vshrl.u32 %v1957, 7
        %v1959 = vsub.s32 0, %v1958
        %v1960 = vrot.slane %v1940, %v1959
        %v1962 = vmul.f32 %v1955, %v1960
        %v1964 = vlaneseq
        %v1965 = vshrl.u32 %v1964, 7
        %v1966 = vsub.s32 0, %v1965
        %v1967 = vrot.slane %v1941, %v1966
        %v1969 = vadd.f32 %v1962, %v1967
        %v1970 = vld [vmem:[%s824] sm:$0xff]
        %v1971 = vld [vmem:[%s824 + $0x8] sm:$0xff]
        %v1972 = vld [vmem:[%s824 + $0x10] sm:$0xff]
        %v1973 = vld [vmem:[%s824 + $0x18] sm:$0xff]
        %v1974 = vld [vmem:[%s827] sm:$0x1]
        %v1976 = vlaneseq
        %v1977 = vshrl.u32 %v1976, 7
        %v1978 = vsub.s32 0, %v1977
        %v1979 = vrot.slane %v1974, %v1978
        %v1982 = vsel %vm892, %v1969, 0
        %1984 = vmatprep.subr.mxu0 0.0
        %1985 = vmatpush1.msra.mxu0 %v1970
        %1986 = vmatprep.subr.mxu0 0.0
        %1987 = vmatpush1.msra.mxu0 %v1971
        %1988 = vmatprep.subr.mxu0 0.0
        %1989 = vmatpush1.msra.mxu0 %v1972
        %1990 = vmatprep.subr.mxu0 0.0
        %1991 = vmatpush1.msra.mxu0 %v1973
        %1992 = vmatprep.subr.mxu0 0.0
        %1993 = vmatpush1.msra.mxu0 0.0
        %1994 = vmatprep.subr.mxu0 0.0
        %1995 = vmatpush1.msra.mxu0 0.0
        %1996 = vmatprep.subr.mxu0 0.0
        %1997 = vmatpush1.msra.mxu0 0.0
        %1998 = vmatprep.subr.mxu0 0.0
        %1999 = vmatpush1.msra.mxu0 0.0
        %2000 = vmatprep.subr.mxu0 0.0
        %2001 = vmatpush1.msra.mxu0 0.0
        %2002 = vmatprep.subr.mxu0 0.0
        %2003 = vmatpush1.msra.mxu0 0.0
        %2004 = vmatprep.subr.mxu0 0.0
        %2005 = vmatpush1.msra.mxu0 0.0
        %2006 = vmatprep.subr.mxu0 0.0
        %2007 = vmatpush1.msra.mxu0 0.0
        %2008 = vmatprep.subr.mxu0 0.0
        %2009 = vmatpush1.msra.mxu0 0.0
        %2010 = vmatprep.subr.mxu0 0.0
        %2011 = vmatpush1.msra.mxu0 0.0
        %2012 = vmatprep.subr.mxu0 0.0
        %2013 = vmatpush1.msra.mxu0 0.0
        %2014 = vmatprep.subr.mxu0 0.0
        %2015 = vmatpush1.msra.mxu0 0.0
        %2016 = vmatprep.subr.mxu0 0.0
        %2017 = vmatpush1.msra.mxu0 0.0
        %2018 = vmatprep.subr.mxu0 0.0
        %2019 = vmatpush1.msra.mxu0 0.0
        %2020 = vmatprep.subr.mxu0 0.0
        %2021 = vmatpush1.msra.mxu0 0.0
        %2022 = vmatprep.subr.mxu0 0.0
        %2023 = vmatpush1.msra.mxu0 0.0
        %2024 = vmatprep.subr.mxu0 0.0
        %2025 = vmatpush1.msra.mxu0 0.0
        %2026 = vmatprep.subr.mxu0 0.0
        %2027 = vmatpush1.msra.mxu0 0.0
        %2028 = vmatprep.subr.mxu0 0.0
        %2029 = vmatpush1.msra.mxu0 0.0
        %2030 = vmatprep.subr.mxu0 0.0
        %2031 = vmatpush1.msra.mxu0 0.0
        %2032 = vmatprep.subr.mxu0 0.0
        %2033 = vmatpush1.msra.mxu0 0.0
        %2034 = vmatprep.subr.mxu0 0.0
        %2035 = vmatpush1.msra.mxu0 0.0
        %2036 = vmatprep.subr.mxu0 0.0
        %2037 = vmatpush1.msra.mxu0 0.0
        %2038 = vmatprep.subr.mxu0 0.0
        %2039 = vmatpush1.msra.mxu0 0.0
        %2040 = vmatprep.subr.mxu0 0.0
        %2041 = vmatpush1.msra.mxu0 0.0
        %2042 = vmatprep.subr.mxu0 0.0
        %2043 = vmatpush1.msra.mxu0 0.0
        %2044 = vmatprep.subr.mxu0 0.0
        %2045 = vmatpush1.msra.mxu0 0.0
        %2046 = vmatprep.subr.mxu0 0.0
        %2047 = vmatpush1.msra.mxu0 0.0
        %2048 = vmatprep.mubr.f32.mxu0 0.0
        %2049 = vmatmul.mubr.f32.gmra.mrb[0].mxu0 %v1982
        %v2050 = vpop.f32.mrb[0].mxu0
        %v2051 = vadd.f32 %v1979, %v2050
        %v2052 = vpop.f32.mrb[0].mxu0
        %2053 = vdwg.mxu0
        %v2054 = vmul.f32 %v2051, %v2051
        %v2055 = vmul.f32 %v2051, %v2054
        %v2056 = vmul.f32 %v2055, 0.044715
        %v2057 = vadd.f32 %v2051, %v2056
        %v2058 = vmul.f32 %v2057, 0.7978846
        %v2059 = vtanh.pop %v2058
        %v2060 = vadd.f32 %v2059, 1.0
        %v2061 = vmul.f32 %v2060, 0.5
        %v2062 = vmul.f32 %v2051, %v2061
        %v2063 = vld [vmem:[%s832] sm:$0xff]
        %v2064 = vld [vmem:[%s832 + $0x8] sm:$0xff]
        %v2065 = vld [vmem:[%s832 + $0x10] sm:$0xff]
        %v2066 = vld [vmem:[%s832 + $0x18] sm:$0xff]
        %v2067 = vld [vmem:[%s832 + $0x20] sm:$0xff]
        %v2068 = vld [vmem:[%s832 + $0x28] sm:$0xff]
        %v2069 = vld [vmem:[%s832 + $0x30] sm:$0xff]
        %v2070 = vld [vmem:[%s832 + $0x38] sm:$0xff]
        %v2071 = vld [vmem:[%s835] sm:$0x1]
        %v2073 = vlaneseq
        %v2074 = vshrl.u32 %v2073, 7
        %v2075 = vsub.s32 0, %v2074
        %v2076 = vrot.slane %v2071, %v2075
        %vm2078 = vcmask 523264
        %v2080 = vsel %vm2078, %v2062, 0
        %2082 = vmatprep.subr.mxu0 0.0
        %2083 = vmatpush1.msra.mxu0 %v2063
        %2084 = vmatprep.subr.mxu0 0.0
        %2085 = vmatpush1.msra.mxu0 %v2064
        %2086 = vmatprep.subr.mxu0 0.0
        %2087 = vmatpush1.msra.mxu0 %v2065
        %2088 = vmatprep.subr.mxu0 0.0
        %2089 = vmatpush1.msra.mxu0 %v2066
        %2090 = vmatprep.subr.mxu0 0.0
        %2091 = vmatpush1.msra.mxu0 %v2067
        %2092 = vmatprep.subr.mxu0 0.0
        %2093 = vmatpush1.msra.mxu0 %v2068
        %2094 = vmatprep.subr.mxu0 0.0
        %2095 = vmatpush1.msra.mxu0 %v2069
        %2096 = vmatprep.subr.mxu0 0.0
        %2097 = vmatpush1.msra.mxu0 %v2070
        %2098 = vmatprep.subr.mxu0 0.0
        %2099 = vmatpush1.msra.mxu0 0.0
        %2100 = vmatprep.subr.mxu0 0.0
        %2101 = vmatpush1.msra.mxu0 0.0
        %2102 = vmatprep.subr.mxu0 0.0
        %2103 = vmatpush1.msra.mxu0 0.0
        %2104 = vmatprep.subr.mxu0 0.0
        %2105 = vmatpush1.msra.mxu0 0.0
        %2106 = vmatprep.subr.mxu0 0.0
        %2107 = vmatpush1.msra.mxu0 0.0
        %2108 = vmatprep.subr.mxu0 0.0
        %2109 = vmatpush1.msra.mxu0 0.0
        %2110 = vmatprep.subr.mxu0 0.0
        %2111 = vmatpush1.msra.mxu0 0.0
        %2112 = vmatprep.subr.mxu0 0.0
        %2113 = vmatpush1.msra.mxu0 0.0
        %2114 = vmatprep.subr.mxu0 0.0
        %2115 = vmatpush1.msra.mxu0 0.0
        %2116 = vmatprep.subr.mxu0 0.0
        %2117 = vmatpush1.msra.mxu0 0.0
        %2118 = vmatprep.subr.mxu0 0.0
        %2119 = vmatpush1.msra.mxu0 0.0
        %2120 = vmatprep.subr.mxu0 0.0
        %2121 = vmatpush1.msra.mxu0 0.0
        %2122 = vmatprep.subr.mxu0 0.0
        %2123 = vmatpush1.msra.mxu0 0.0
        %2124 = vmatprep.subr.mxu0 0.0
        %2125 = vmatpush1.msra.mxu0 0.0
        %2126 = vmatprep.subr.mxu0 0.0
        %2127 = vmatpush1.msra.mxu0 0.0
        %2128 = vmatprep.subr.mxu0 0.0
        %2129 = vmatpush1.msra.mxu0 0.0
        %2130 = vmatprep.subr.mxu0 0.0
        %2131 = vmatpush1.msra.mxu0 0.0
        %2132 = vmatprep.subr.mxu0 0.0
        %2133 = vmatpush1.msra.mxu0 0.0
        %2134 = vmatprep.subr.mxu0 0.0
        %2135 = vmatpush1.msra.mxu0 0.0
        %2136 = vmatprep.subr.mxu0 0.0
        %2137 = vmatpush1.msra.mxu0 0.0
        %2138 = vmatprep.subr.mxu0 0.0
        %2139 = vmatpush1.msra.mxu0 0.0
        %2140 = vmatprep.subr.mxu0 0.0
        %2141 = vmatpush1.msra.mxu0 0.0
        %2142 = vmatprep.subr.mxu0 0.0
        %2143 = vmatpush1.msra.mxu0 0.0
        %2144 = vmatprep.subr.mxu0 0.0
        %2145 = vmatpush1.msra.mxu0 0.0
        %2146 = vmatprep.mubr.f32.mxu0 0.0
        %2147 = vmatmul.mubr.f32.gmra.mrb[0].mxu0 %v2080
        %v2148 = vpop.f32.mrb[0].mxu0
        %v2149 = vadd.f32 %v2076, %v2148
        %v2150 = vpop.f32.mrb[0].mxu0
        %2151 = vdwg.mxu0
        %v2152 = vadd.f32 %v2149, %v1969
        %v2153 = vld [vmem:[%s838] sm:$0x1]
        %v2154 = vld [vmem:[%s841] sm:$0x1]
        %v2155 = vsel %vm892, %v2152, 0.0
        %2156 = vadd.xlane.f32.xlu0 %v2155
        %v2157 = vpop.xlane.xlu0 %2156
        %v2158 = vmul.f32 %v2157, %v1945
        %v2159 = vsub.f32 %v2152, %v2158
        %v2160 = vmul.f32 %v2159, %v2159
        %v2161 = vsel %vm892, %v2160, 0.0
        %2162 = vadd.xlane.f32.xlu0 %v2161
        %v2163 = vpop.xlane.xlu0 %2162
        %v2164 = vmul.f32 %v2163, %v1945
        %v2165 = vadd.f32 %v2164, 1e-05
        %v2166 = vrsqrt.pop %v2165
        %v2167 = vmul.f32 %v2159, %v2166
        %v2169 = vlaneseq
        %v2170 = vshrl.u32 %v2169, 7
        %v2171 = vsub.s32 0, %v2170
        %v2172 = vrot.slane %v2153, %v2171
        %v2174 = vmul.f32 %v2167, %v2172
        %v2176 = vlaneseq
        %v2177 = vshrl.u32 %v2176, 7
        %v2178 = vsub.s32 0, %v2177
        %v2179 = vrot.slane %v2154, %v2178
        %v2181 = vadd.f32 %v2174, %v2179
        %2182 = vst.msk [vmem:[#allocation2] sm:$0xff] %vm892, %v2181
        %p2183 = scmp.eq.s32.totalorder %s39, 1
        // Predicated region
        $region105: #{defect_prediction_forward.1} parent=99 // pred_check
          %p2184 = pneg %p2183
        $region106: #{defect_prediction_forward.1} parent=99 // pred_check_branch
          %2186 = sbr.rel (%p2184) target = $region108
        $region107: #{defect_prediction_forward.1} parent=99 // pred_region
          %v2187 = vld [vmem:[%s16] sm:$0xff]
          %v2188 = vld [vmem:[%s16 + $0x8] sm:$0xff]
          %v2189 = vld [vmem:[%s16 + $0x10] sm:$0xff]
          %v2190 = vld [vmem:[%s16 + $0x18] sm:$0xff]
          %v2191 = vld [vmem:[%s17] sm:$0x1]
          %v2193 = vsel %vm892, %v2181, 0
          %2195 = vmatprep.subr.mxu0 0.0
          %2196 = vmatpush1.msra.mxu0 %v2187
          %2197 = vmatprep.subr.mxu0 0.0
          %2198 = vmatpush1.msra.mxu0 %v2188
          %2199 = vmatprep.subr.mxu0 0.0
          %2200 = vmatpush1.msra.mxu0 %v2189
          %2201 = vmatprep.subr.mxu0 0.0
          %2202 = vmatpush1.msra.mxu0 %v2190
          %2203 = vmatprep.subr.mxu0 0.0
          %2204 = vmatpush1.msra.mxu0 0.0
          %2205 = vmatprep.subr.mxu0 0.0
          %2206 = vmatpush1.msra.mxu0 0.0
          %2207 = vmatprep.subr.mxu0 0.0
          %2208 = vmatpush1.msra.mxu0 0.0
          %2209 = vmatprep.subr.mxu0 0.0
          %2210 = vmatpush1.msra.mxu0 0.0
          %2211 = vmatprep.subr.mxu0 0.0
          %2212 = vmatpush1.msra.mxu0 0.0
          %2213 = vmatprep.subr.mxu0 0.0
          %2214 = vmatpush1.msra.mxu0 0.0
          %2215 = vmatprep.subr.mxu0 0.0
          %2216 = vmatpush1.msra.mxu0 0.0
          %2217 = vmatprep.subr.mxu0 0.0
          %2218 = vmatpush1.msra.mxu0 0.0
          %2219 = vmatprep.subr.mxu0 0.0
          %2220 = vmatpush1.msra.mxu0 0.0
          %2221 = vmatprep.subr.mxu0 0.0
          %2222 = vmatpush1.msra.mxu0 0.0
          %2223 = vmatprep.subr.mxu0 0.0
          %2224 = vmatpush1.msra.mxu0 0.0
          %2225 = vmatprep.subr.mxu0 0.0
          %2226 = vmatpush1.msra.mxu0 0.0
          %2227 = vmatprep.subr.mxu0 0.0
          %2228 = vmatpush1.msra.mxu0 0.0
          %2229 = vmatprep.subr.mxu0 0.0
          %2230 = vmatpush1.msra.mxu0 0.0
          %2231 = vmatprep.subr.mxu0 0.0
          %2232 = vmatpush1.msra.mxu0 0.0
          %2233 = vmatprep.subr.mxu0 0.0
          %2234 = vmatpush1.msra.mxu0 0.0
          %2235 = vmatprep.subr.mxu0 0.0
          %2236 = vmatpush1.msra.mxu0 0.0
          %2237 = vmatprep.subr.mxu0 0.0
          %2238 = vmatpush1.msra.mxu0 0.0
          %2239 = vmatprep.subr.mxu0 0.0
          %2240 = vmatpush1.msra.mxu0 0.0
          %2241 = vmatprep.subr.mxu0 0.0
          %2242 = vmatpush1.msra.mxu0 0.0
          %2243 = vmatprep.subr.mxu0 0.0
          %2244 = vmatpush1.msra.mxu0 0.0
          %2245 = vmatprep.subr.mxu0 0.0
          %2246 = vmatpush1.msra.mxu0 0.0
          %2247 = vmatprep.subr.mxu0 0.0
          %2248 = vmatpush1.msra.mxu0 0.0
          %2249 = vmatprep.subr.mxu0 0.0
          %2250 = vmatpush1.msra.mxu0 0.0
          %2251 = vmatprep.subr.mxu0 0.0
          %2252 = vmatpush1.msra.mxu0 0.0
          %2253 = vmatprep.subr.mxu0 0.0
          %2254 = vmatpush1.msra.mxu0 0.0
          %2255 = vmatprep.subr.mxu0 0.0
          %2256 = vmatpush1.msra.mxu0 0.0
          %2257 = vmatprep.subr.mxu0 0.0
          %2258 = vmatpush1.msra.mxu0 0.0
          %2259 = vmatprep.mubr.f32.mxu0 0.0
          %2260 = vmatmul.mubr.f32.gmra.mrb[0].mxu0 %v2193
          %v2261 = vpop.f32.mrb[0].mxu0
          %v2262 = vadd.f32 %v2191, %v2261
          %v2263 = vpop.f32.mrb[0].mxu0
          %2264 = vdwg.mxu0
          %v2265 = vmax.f32 %v2262, 0.0
          %v2266 = vld [vmem:[%s18] sm:$0xff]
          %v2267 = vld [vmem:[%s18 + $0x8] sm:$0xff]
          %v2268 = vld [vmem:[%s19] sm:$0x1]
          %vm2269 = vcmask 130048
          %v2271 = vsel %vm2269, %v2265, 0
          %2273 = vmatprep.subr.mxu0 0.0
          %2274 = vmatpush1.msra.mxu0 %v2266
          %2275 = vmatprep.subr.mxu0 0.0
          %2276 = vmatpush1.msra.mxu0 %v2267
          %2277 = vmatprep.subr.mxu0 0.0
          %2278 = vmatpush1.msra.mxu0 0.0
          %2279 = vmatprep.subr.mxu0 0.0
          %2280 = vmatpush1.msra.mxu0 0.0
          %2281 = vmatprep.subr.mxu0 0.0
          %2282 = vmatpush1.msra.mxu0 0.0
          %2283 = vmatprep.subr.mxu0 0.0
          %2284 = vmatpush1.msra.mxu0 0.0
          %2285 = vmatprep.subr.mxu0 0.0
          %2286 = vmatpush1.msra.mxu0 0.0
          %2287 = vmatprep.subr.mxu0 0.0
          %2288 = vmatpush1.msra.mxu0 0.0
          %2289 = vmatprep.subr.mxu0 0.0
          %2290 = vmatpush1.msra.mxu0 0.0
          %2291 = vmatprep.subr.mxu0 0.0
          %2292 = vmatpush1.msra.mxu0 0.0
          %2293 = vmatprep.subr.mxu0 0.0
          %2294 = vmatpush1.msra.mxu0 0.0
          %2295 = vmatprep.subr.mxu0 0.0
          %2296 = vmatpush1.msra.mxu0 0.0
          %2297 = vmatprep.subr.mxu0 0.0
          %2298 = vmatpush1.msra.mxu0 0.0
          %2299 = vmatprep.subr.mxu0 0.0
          %2300 = vmatpush1.msra.mxu0 0.0
          %2301 = vmatprep.subr.mxu0 0.0
          %2302 = vmatpush1.msra.mxu0 0.0
          %2303 = vmatprep.subr.mxu0 0.0
          %2304 = vmatpush1.msra.mxu0 0.0
          %2305 = vmatprep.subr.mxu0 0.0
          %2306 = vmatpush1.msra.mxu0 0.0
          %2307 = vmatprep.subr.mxu0 0.0
          %2308 = vmatpush1.msra.mxu0 0.0
          %2309 = vmatprep.subr.mxu0 0.0
          %2310 = vmatpush1.msra.mxu0 0.0
          %2311 = vmatprep.subr.mxu0 0.0
          %2312 = vmatpush1.msra.mxu0 0.0
          %2313 = vmatprep.subr.mxu0 0.0
          %2314 = vmatpush1.msra.mxu0 0.0
          %2315 = vmatprep.subr.mxu0 0.0
          %2316 = vmatpush1.msra.mxu0 0.0
          %2317 = vmatprep.subr.mxu0 0.0
          %2318 = vmatpush1.msra.mxu0 0.0
          %2319 = vmatprep.subr.mxu0 0.0
          %2320 = vmatpush1.msra.mxu0 0.0
          %2321 = vmatprep.subr.mxu0 0.0
          %2322 = vmatpush1.msra.mxu0 0.0
          %2323 = vmatprep.subr.mxu0 0.0
          %2324 = vmatpush1.msra.mxu0 0.0
          %2325 = vmatprep.subr.mxu0 0.0
          %2326 = vmatpush1.msra.mxu0 0.0
          %2327 = vmatprep.subr.mxu0 0.0
          %2328 = vmatpush1.msra.mxu0 0.0
          %2329 = vmatprep.subr.mxu0 0.0
          %2330 = vmatpush1.msra.mxu0 0.0
          %2331 = vmatprep.subr.mxu0 0.0
          %2332 = vmatpush1.msra.mxu0 0.0
          %2333 = vmatprep.subr.mxu0 0.0
          %2334 = vmatpush1.msra.mxu0 0.0
          %2335 = vmatprep.subr.mxu0 0.0
          %2336 = vmatpush1.msra.mxu0 0.0
          %2337 = vmatprep.mubr.f32.mxu0 0.0
          %2338 = vmatmul.mubr.f32.gmra.mrb[0].mxu0 %v2271
          %v2339 = vpop.f32.mrb[0].mxu0
          %v2340 = vadd.f32 %v2268, %v2339
          %v2341 = vpop.f32.mrb[0].mxu0
          %2342 = vdwg.mxu0
          %vm2343 = vcmask 8192
          %2344 = vst.msk [vmem:[%s790] sm:$0x1] %vm2343, %v2340
        $region108: #{defect_prediction_forward.1} parent=99 // pred_fallthru
          _
        %s2345 = sand.u32 %s544, 1
        %s2346 = scalar_lea.sflag [#allocation4], %s2345
        %s2347 = sand.u32 %s544, 1
        %s2348 = scalar_lea.vmem [#allocation3], %s2347
        // Predicated region
        $region109: #{defect_prediction_forward.1} parent=99 // pred_check
          %p2349 = pneg %p554
        $region110: #{defect_prediction_forward.1} parent=99 // pred_check_branch
          %2351 = sbr.rel (%p2349) target = $region112
        $region111: #{defect_prediction_forward.1} parent=99 // pred_region
          %s2353 = ssub.s32 16, 16
          %2354 = vsyncadd %s2346, %s2353
          %s2355 = smul.addr %s38, 16
          %s2356 = scalar_lea.hbm %s20, %s2355
          %s2358 = sshll.u32 %s2348, 4
          %s2359 = int_to_ptr.vmem [resolvable:$true] %s2358
          %2361 = dma.vmem_to_hbm [thread:$0]  %s2359, 16, %s2356, %s2346
        $region112: #{defect_prediction_forward.1} parent=99 // pred_fallthru
          _
      $region100: #{defect_prediction_forward.1} parent=5 // pred_fallthru
        _
      %p2362 = scmp.le.s32.totalorder 2, %s29
      // Predicated region
      $region113: #{defect_prediction_forward.1} parent=5 // pred_check
        %p2363 = pneg %p2362
      $region114: #{defect_prediction_forward.1} parent=5 // pred_check_branch
        %2365 = sbr.rel (%p2363) target = $region116
      $region115: #{defect_prediction_forward.1} parent=5 // pred_region
        %s2366 = ssub.s32 %s29, 2
        // Predicated region
        $region117: #{defect_prediction_forward.1} parent=115 // pred_check
          %p2367 = pneg %p560
        $region118: #{defect_prediction_forward.1} parent=115 // pred_check_branch
          %2369 = sbr.rel (%p2367) target = $region120
        $region119: #{defect_prediction_forward.1} parent=115 // pred_region
          %s2370 = sand.u32 %s545, 1
          %s2371 = scalar_lea.sflag [#allocation4], %s2370
          %s2372 = sand.u32 %s545, 1
          %s2373 = scalar_lea.vmem [#allocation3], %s2372
          %2374 = dma.done %s2371, 16
        $region120: #{defect_prediction_forward.1} parent=115 // pred_fallthru
          _
      $region116: #{defect_prediction_forward.1} parent=5 // pred_fallthru
        _
    $region6: #{defect_prediction_forward.1} parent=1 // loop_footer
      %s33 = sadd.s32 1, %s29
    $region7: #{defect_prediction_forward.1} parent=1 // loop_footer_branch
      %28 = sbr.rel target = $region3
    $region8: #{defect_prediction_forward.1} parent=1 // loop_exit
      _
    %2375 = vsyncpa [#allocation4], 1
    %s2376 = scalar_lea.sflag [#allocation4], 1
    %2377 = vsyncpa %s2376, 1

</llo_original>
